<compile_context>
chip_gen: v7x
topology: tpu7x:2x2x1
jax: 0.10.0
libtpu: 0.0.40
codegen_flags: <defaults>
</compile_context>

<pallas_src>
import numpy as np
import jax
import jax.numpy as jnp
from jax import lax
from jax.experimental import pallas as pl
from jax.experimental.pallas import tpu as pltpu


# ---------------------------------------------------------------------------
# Pallas kernel. One batch tile per grid step, everything in VMEM.
#   x_ref   : (T, TB, D)    time-major input tile
#   wih_ref : (D, 4H)       input->gates weight, gate columns ordered i,f,o,g
#   whh_ref : (H, 4H)       hidden->gates weight, gate columns ordered i,f,o,g
#   b_ref   : (1, 4H)       b_ih + b_hh, permuted to i,f,o,g
#   wf_ref  : (H, 2)        fused head weight  (w1.T @ w2.T)
#   bf_ref  : (1, 2)        fused head bias    (b1 @ w2.T + b2)
#   out_ref : (T, TB, 2)
#   xg_ref  : (T, TB, 4H)   VMEM scratch: hoisted input projection
#   hs_ref  : (T, TB, H)    VMEM scratch: per-step hidden states
# ---------------------------------------------------------------------------
def lstm_head_kernel(x_ref, wih_ref, whh_ref, b_ref, wf_ref, bf_ref, out_ref,
                     xg_ref, hs_ref):
    T, TB, _ = x_ref.shape
    H = whh_ref.shape[0]

    # Resident weights, loaded once.
    wih = wih_ref[...]
    whh = whh_ref[...]
    wf = wf_ref[...]
    # Pre-broadcast biases once (JAX does not CSE broadcast_in_dim).
    b = jnp.broadcast_to(b_ref[...], (TB, 4 * H))
    bf = jnp.broadcast_to(bf_ref[...], (TB, 2))

    # --- Phase 1: input projection, hoisted off the serial h-chain. --------
    # T independent (TB, D) @ (D, 4H) matmuls with the bias folded in; no
    # recurrence dependency, so the MXU can pipeline them freely.
    for t in range(T):
        xg_ref[t] = jnp.dot(x_ref[t], wih,
                            preferred_element_type=jnp.float32) + b

    # --- Phase 2: serial LSTM recurrence (gate order i, f, o | g). ---------
    def step(t, carry):
        h, c = carry
        g = xg_ref[t] + jnp.dot(h, whh, preferred_element_type=jnp.float32)
        sg = jax.nn.sigmoid(g[:, :3 * H])        # i, f, o (contiguous 3H lanes)
        gg = jnp.tanh(g[:, 3 * H:])              # cell candidate (last H lanes)
        i = sg[:, 0 * H:1 * H]
        f = sg[:, 1 * H:2 * H]
        o = sg[:, 2 * H:3 * H]
        c = f * c + i * gg
        h = o * jnp.tanh(c)
        hs_ref[t] = h
        return h, c

    h0 = jnp.zeros((TB, H), jnp.float32)
    c0 = jnp.zeros((TB, H), jnp.float32)
    lax.fori_loop(0, T, step, (h0, c0), unroll=min(T, 8))

    # --- Phase 3: fused head + stores, after the recurrence. ---------------
    # Independent per-t matmuls/stores; the lane-sparse (.., 2) stores are no
    # longer inside the serial body.
    for t in range(T):
        out_ref[t] = (jnp.dot(hs_ref[t], wf, preferred_element_type=jnp.float32)
                      + bf).astype(out_ref.dtype)


# ---------------------------------------------------------------------------
# Wrapper: layout plumbing (time-major transpose, gate-axis permutation,
# weight transposes, head fusion, tile sizing) done here, not in the kernel.
# ---------------------------------------------------------------------------
def lstm_model_forward(x, params):
    B, T, D = x.shape
    H = params["w_hh"].shape[1]

    # Gate-axis permutation: PyTorch order (i, f, g, o) -> kernel order
    # (i, f, o, g) so sigmoid covers the first 3H lanes and tanh the last H.
    perm = np.concatenate([np.arange(0, 2 * H),
                           np.arange(3 * H, 4 * H),
                           np.arange(2 * H, 3 * H)])
    wih_t = params["w_ih"][perm].T                               # (D, 4H)
    whh_t = params["w_hh"][perm].T                               # (H, 4H)
    b = (params["b_ih"] + params["b_hh"])[perm][None, :]         # (1, 4H)

    # Fuse the two heads (no nonlinearity between them in the PyTorch forward).
    w_fused = params["w1"].T @ params["w2"].T                    # (H, 2)
    b_fused = (params["b1"] @ params["w2"].T + params["b2"])[None, :]  # (1, 2)

    x_tm = jnp.transpose(x, (1, 0, 2))                           # (T, B, D)

    # Batch tile: as large as VMEM comfortably allows (fills the MXU M dim),
    # multiple of 8; splits into multiple grid steps only when B is large
    # enough (which also shards over TensorCores on multi-TC chips).
    if B % 8 == 0:
        TB = min(B, 256)
        while B % TB:
            TB -= 8
    else:
        TB = B
    grid = (B // TB,)

    # Explicit VMEM budget (keeps the tile valid on v7x's 64 MiB physical and
    # raises the scoped default on v5e/v6e when TB grows).
    f32 = 4
    vmem_est = (2 * T * TB * D * f32                 # x tile, double-buffered
                + 2 * T * TB * 2 * f32               # out tile, double-buffered
                + T * TB * 4 * H * f32               # xg scratch
                + T * TB * H * f32                   # h scratch
                + (D + H + 1) * 4 * H * f32          # gate weights + bias
                + (H + 1) * 2 * f32)                 # fused head
    vmem_limit = int(min(max(2 * vmem_est + (4 << 20), 16 << 20), 48 << 20))

    out_tm = pl.pallas_call(
        lstm_head_kernel,
        out_shape=jax.ShapeDtypeStruct((T, B, 2), jnp.float32),
        grid_spec=pltpu.PrefetchScalarGridSpec(
            num_scalar_prefetch=0,
            grid=grid,
            in_specs=[
                pl.BlockSpec((T, TB, D), lambda i: (0, i, 0)),   # x (time-major)
                pl.BlockSpec((D, 4 * H), lambda i: (0, 0)),      # wih (resident)
                pl.BlockSpec((H, 4 * H), lambda i: (0, 0)),      # whh (resident)
                pl.BlockSpec((1, 4 * H), lambda i: (0, 0)),      # bias
                pl.BlockSpec((H, 2), lambda i: (0, 0)),          # fused head W
                pl.BlockSpec((1, 2), lambda i: (0, 0)),          # fused head b
            ],
            out_specs=pl.BlockSpec((T, TB, 2), lambda i: (0, i, 0)),
            scratch_shapes=[
                pltpu.VMEM((T, TB, 4 * H), jnp.float32),         # xg
                pltpu.VMEM((T, TB, H), jnp.float32),             # hidden states
            ],
        ),
        compiler_params=pltpu.CompilerParams(
            dimension_semantics=("parallel",),
            vmem_limit_bytes=vmem_limit),
    )(x_tm, wih_t, whh_t, b, w_fused, b_fused)

    return jnp.transpose(out_tm, (1, 0, 2))                      # (B, T, 2)


# ---------------------------------------------------------------------------
# Deterministic parameter init (mirrors module __init__: orthogonal LSTM
# weights, zero LSTM biases, default-style uniform init for the linears).
# ---------------------------------------------------------------------------
def _orthogonal(key, shape):
    rows, cols = shape
    a = jax.random.normal(key, (rows, cols) if rows >= cols else (cols, rows),
                          dtype=jnp.float32)
    q, r = jnp.linalg.qr(a)
    q = q * jnp.sign(jnp.diag(r))
    if rows < cols:
        q = q.T
    return q.astype(jnp.float32)


def make_params(key, input_size, hidden_size):
    H = hidden_size
    ks = jax.random.split(key, 6)
    params = {
        "w_ih": _orthogonal(ks[0], (4 * H, input_size)),
        "w_hh": _orthogonal(ks[1], (4 * H, H)),
        "b_ih": jnp.zeros((4 * H,), jnp.float32),
        "b_hh": jnp.zeros((4 * H,), jnp.float32),
    }
    bound1 = 1.0 / np.sqrt(H)
    params["w1"] = jax.random.uniform(ks[2], (64, H), jnp.float32, -bound1, bound1)
    params["b1"] = jax.random.uniform(ks[3], (64,), jnp.float32, -bound1, bound1)
    bound2 = 1.0 / np.sqrt(64)
    params["w2"] = jax.random.uniform(ks[4], (2, 64), jnp.float32, -bound2, bound2)
    params["b2"] = jax.random.uniform(ks[5], (2,), jnp.float32, -bound2, bound2)
    return params


# ---------------------------------------------------------------------------
# Pure-JAX reference (mirrors torch.nn.LSTM + Linear semantics) for checking.
# ---------------------------------------------------------------------------
def reference_forward(x, params):
    B, T, _ = x.shape
    H = params["w_hh"].shape[1]
    w_ih, w_hh = params["w_ih"], params["w_hh"]
    b = params["b_ih"] + params["b_hh"]

    def cell(carry, x_t):
        h, c = carry
        g = x_t @ w_ih.T + h @ w_hh.T + b
        i = jax.nn.sigmoid(g[:, 0 * H:1 * H])
        f = jax.nn.sigmoid(g[:, 1 * H:2 * H])
        gg = jnp.tanh(g[:, 2 * H:3 * H])
        o = jax.nn.sigmoid(g[:, 3 * H:4 * H])
        c = f * c + i * gg
        h = o * jnp.tanh(c)
        return (h, c), h

    (h, c), hs = lax.scan(cell, (jnp.zeros((B, H)), jnp.zeros((B, H))),
                          jnp.transpose(x, (1, 0, 2)))
    hs = jnp.transpose(hs, (1, 0, 2))                            # (B, T, H)
    l1 = hs @ params["w1"].T + params["b1"]
    l2 = l1 @ params["w2"].T + params["b2"]
    return l2


if __name__ == "__main__":
    B, T, D_IN, HIDDEN = 2, 8, 32, 32
    key = jax.random.PRNGKey(0)
    k_x, k_p = jax.random.split(key)
    x = jax.random.normal(k_x, (B, T, D_IN), dtype=jnp.float32)
    params = make_params(k_p, D_IN, HIDDEN)

    out = jax.block_until_ready(lstm_model_forward(x, params))
    ref = jax.block_until_ready(reference_forward(x, params))

    assert out.shape == (B, T, 2)
    np.testing.assert_allclose(np.asarray(out), np.asarray(ref),
                               rtol=1e-4, atol=1e-4)
    print("KERNEL_OK")
</pallas_src>

<mosaic_0001>
module attributes {stable_mosaic.version = 11 : i64} {
  func.func @lstm_head_kernel(%arg0: i32, %arg1: memref<8x2x32xf32, #tpu.memory_space<vmem>>, %arg2: memref<32x128xf32, #tpu.memory_space<vmem>>, %arg3: memref<32x128xf32, #tpu.memory_space<vmem>>, %arg4: memref<1x128xf32, #tpu.memory_space<vmem>>, %arg5: memref<32x2xf32, #tpu.memory_space<vmem>>, %arg6: memref<1x2xf32, #tpu.memory_space<vmem>>, %arg7: memref<8x2x2xf32, #tpu.memory_space<vmem>>, %arg8: memref<8x2x128xf32, #tpu.memory_space<vmem>>, %arg9: memref<8x2x32xf32, #tpu.memory_space<vmem>>) attributes {dimension_semantics = [#tpu.dimension_semantics<parallel>], iteration_bounds = array<i64: 1>, scalar_prefetch = 0 : i64, scratch_operands = 2 : i64, tpu.core_type = #tpu.core_type<tc>, window_params = [{transform_indices = @transform_0, window_bounds = array<i64: 8, 2, 32>}, {pipeline_mode = #tpu.pipeline_mode<synchronous>, transform_indices = @transform_1, window_bounds = array<i64: 32, 128>}, {pipeline_mode = #tpu.pipeline_mode<synchronous>, transform_indices = @transform_2, window_bounds = array<i64: 32, 128>}, {pipeline_mode = #tpu.pipeline_mode<synchronous>, transform_indices = @transform_3, window_bounds = array<i64: 1, 128>}, {pipeline_mode = #tpu.pipeline_mode<synchronous>, transform_indices = @transform_4, window_bounds = array<i64: 32, 2>}, {pipeline_mode = #tpu.pipeline_mode<synchronous>, transform_indices = @transform_5, window_bounds = array<i64: 1, 2>}, {transform_indices = @transform_6, window_bounds = array<i64: 8, 2, 2>}]} {
    %c0 = arith.constant 0 : index
    %c0_0 = arith.constant 0 : index
    %0 = vector.load %arg2[%c0, %c0_0] : memref<32x128xf32, #tpu.memory_space<vmem>>, vector<32x128xf32>
    %c0_1 = arith.constant 0 : index
    %c0_2 = arith.constant 0 : index
    %1 = vector.load %arg3[%c0_1, %c0_2] : memref<32x128xf32, #tpu.memory_space<vmem>>, vector<32x128xf32>
    %c0_3 = arith.constant 0 : index
    %c0_4 = arith.constant 0 : index
    %2 = vector.load %arg5[%c0_3, %c0_4] : memref<32x2xf32, #tpu.memory_space<vmem>>, vector<32x2xf32>
    %c0_5 = arith.constant 0 : index
    %c0_6 = arith.constant 0 : index
    %3 = vector.load %arg4[%c0_5, %c0_6] : memref<1x128xf32, #tpu.memory_space<vmem>>, vector<1x128xf32>
    %4 = vector.shape_cast %3 : vector<1x128xf32> to vector<1x128xf32>
    %5 = vector.broadcast %4 : vector<1x128xf32> to vector<2x128xf32>
    %c0_7 = arith.constant 0 : index
    %c0_8 = arith.constant 0 : index
    %6 = vector.load %arg6[%c0_7, %c0_8] : memref<1x2xf32, #tpu.memory_space<vmem>>, vector<1x2xf32>
    %7 = vector.shape_cast %6 : vector<1x2xf32> to vector<1x2xf32>
    %8 = vector.broadcast %7 : vector<1x2xf32> to vector<2x2xf32>
    %c0_9 = arith.constant 0 : index
    %c0_10 = arith.constant 0 : index
    %c0_11 = arith.constant 0 : index
    %9 = vector.load %arg1[%c0_9, %c0_10, %c0_11] : memref<8x2x32xf32, #tpu.memory_space<vmem>>, vector<1x2x32xf32>
    %10 = vector.shape_cast %9 : vector<1x2x32xf32> to vector<2x32xf32>
    %cst = arith.constant dense<0.000000e+00> : vector<2x128xf32>
    %11 = tpu.matmul %10, %0, %cst {dimension_numbers = #tpu.dot_dimension_numbers<[1], [0], [0], [1], [0, 0, 1, 1], [], []>} : vector<2x32xf32>, vector<32x128xf32>, vector<2x128xf32> -> vector<2x128xf32>
    %12 = arith.addf %11, %5 : vector<2x128xf32>
    %c0_12 = arith.constant 0 : index
    %c0_13 = arith.constant 0 : index
    %c0_14 = arith.constant 0 : index
    %13 = vector.load %arg8[%c0_12, %c0_13, %c0_14] : memref<8x2x128xf32, #tpu.memory_space<vmem>>, vector<1x2x128xf32>
    %14 = vector.shape_cast %13 : vector<1x2x128xf32> to vector<2x128xf32>
    %15 = vector.shape_cast %12 : vector<2x128xf32> to vector<1x2x128xf32>
    tpu.vector_store %arg8[%c0_12, %c0_13, %c0_14], %15 {strides = array<i32>} : memref<8x2x128xf32, #tpu.memory_space<vmem>>, vector<1x2x128xf32>,
    %c1 = arith.constant 1 : index
    %c0_15 = arith.constant 0 : index
    %c0_16 = arith.constant 0 : index
    %16 = vector.load %arg1[%c1, %c0_15, %c0_16] : memref<8x2x32xf32, #tpu.memory_space<vmem>>, vector<1x2x32xf32>
    %17 = vector.shape_cast %16 : vector<1x2x32xf32> to vector<2x32xf32>
    %cst_17 = arith.constant dense<0.000000e+00> : vector<2x128xf32>
    %18 = tpu.matmul %17, %0, %cst_17 {dimension_numbers = #tpu.dot_dimension_numbers<[1], [0], [0], [1], [0, 0, 1, 1], [], []>} : vector<2x32xf32>, vector<32x128xf32>, vector<2x128xf32> -> vector<2x128xf32>
    %19 = arith.addf %18, %5 : vector<2x128xf32>
    %c1_18 = arith.constant 1 : index
    %c0_19 = arith.constant 0 : index
    %c0_20 = arith.constant 0 : index
    %20 = vector.load %arg8[%c1_18, %c0_19, %c0_20] : memref<8x2x128xf32, #tpu.memory_space<vmem>>, vector<1x2x128xf32>
    %21 = vector.shape_cast %20 : vector<1x2x128xf32> to vector<2x128xf32>
    %22 = vector.shape_cast %19 : vector<2x128xf32> to vector<1x2x128xf32>
    tpu.vector_store %arg8[%c1_18, %c0_19, %c0_20], %22 {strides = array<i32>} : memref<8x2x128xf32, #tpu.memory_space<vmem>>, vector<1x2x128xf32>,
    %c2 = arith.constant 2 : index
    %c0_21 = arith.constant 0 : index
    %c0_22 = arith.constant 0 : index
    %23 = vector.load %arg1[%c2, %c0_21, %c0_22] : memref<8x2x32xf32, #tpu.memory_space<vmem>>, vector<1x2x32xf32>
    %24 = vector.shape_cast %23 : vector<1x2x32xf32> to vector<2x32xf32>
    %cst_23 = arith.constant dense<0.000000e+00> : vector<2x128xf32>
    %25 = tpu.matmul %24, %0, %cst_23 {dimension_numbers = #tpu.dot_dimension_numbers<[1], [0], [0], [1], [0, 0, 1, 1], [], []>} : vector<2x32xf32>, vector<32x128xf32>, vector<2x128xf32> -> vector<2x128xf32>
    %26 = arith.addf %25, %5 : vector<2x128xf32>
    %c2_24 = arith.constant 2 : index
    %c0_25 = arith.constant 0 : index
    %c0_26 = arith.constant 0 : index
    %27 = vector.load %arg8[%c2_24, %c0_25, %c0_26] : memref<8x2x128xf32, #tpu.memory_space<vmem>>, vector<1x2x128xf32>
    %28 = vector.shape_cast %27 : vector<1x2x128xf32> to vector<2x128xf32>
    %29 = vector.shape_cast %26 : vector<2x128xf32> to vector<1x2x128xf32>
    tpu.vector_store %arg8[%c2_24, %c0_25, %c0_26], %29 {strides = array<i32>} : memref<8x2x128xf32, #tpu.memory_space<vmem>>, vector<1x2x128xf32>,
    %c3 = arith.constant 3 : index
    %c0_27 = arith.constant 0 : index
    %c0_28 = arith.constant 0 : index
    %30 = vector.load %arg1[%c3, %c0_27, %c0_28] : memref<8x2x32xf32, #tpu.memory_space<vmem>>, vector<1x2x32xf32>
    %31 = vector.shape_cast %30 : vector<1x2x32xf32> to vector<2x32xf32>
    %cst_29 = arith.constant dense<0.000000e+00> : vector<2x128xf32>
    %32 = tpu.matmul %31, %0, %cst_29 {dimension_numbers = #tpu.dot_dimension_numbers<[1], [0], [0], [1], [0, 0, 1, 1], [], []>} : vector<2x32xf32>, vector<32x128xf32>, vector<2x128xf32> -> vector<2x128xf32>
    %33 = arith.addf %32, %5 : vector<2x128xf32>
    %c3_30 = arith.constant 3 : index
    %c0_31 = arith.constant 0 : index
    %c0_32 = arith.constant 0 : index
    %34 = vector.load %arg8[%c3_30, %c0_31, %c0_32] : memref<8x2x128xf32, #tpu.memory_space<vmem>>, vector<1x2x128xf32>
    %35 = vector.shape_cast %34 : vector<1x2x128xf32> to vector<2x128xf32>
    %36 = vector.shape_cast %33 : vector<2x128xf32> to vector<1x2x128xf32>
    tpu.vector_store %arg8[%c3_30, %c0_31, %c0_32], %36 {strides = array<i32>} : memref<8x2x128xf32, #tpu.memory_space<vmem>>, vector<1x2x128xf32>,
    %c4 = arith.constant 4 : index
    %c0_33 = arith.constant 0 : index
    %c0_34 = arith.constant 0 : index
    %37 = vector.load %arg1[%c4, %c0_33, %c0_34] : memref<8x2x32xf32, #tpu.memory_space<vmem>>, vector<1x2x32xf32>
    %38 = vector.shape_cast %37 : vector<1x2x32xf32> to vector<2x32xf32>
    %cst_35 = arith.constant dense<0.000000e+00> : vector<2x128xf32>
    %39 = tpu.matmul %38, %0, %cst_35 {dimension_numbers = #tpu.dot_dimension_numbers<[1], [0], [0], [1], [0, 0, 1, 1], [], []>} : vector<2x32xf32>, vector<32x128xf32>, vector<2x128xf32> -> vector<2x128xf32>
    %40 = arith.addf %39, %5 : vector<2x128xf32>
    %c4_36 = arith.constant 4 : index
    %c0_37 = arith.constant 0 : index
    %c0_38 = arith.constant 0 : index
    %41 = vector.load %arg8[%c4_36, %c0_37, %c0_38] : memref<8x2x128xf32, #tpu.memory_space<vmem>>, vector<1x2x128xf32>
    %42 = vector.shape_cast %41 : vector<1x2x128xf32> to vector<2x128xf32>
    %43 = vector.shape_cast %40 : vector<2x128xf32> to vector<1x2x128xf32>
    tpu.vector_store %arg8[%c4_36, %c0_37, %c0_38], %43 {strides = array<i32>} : memref<8x2x128xf32, #tpu.memory_space<vmem>>, vector<1x2x128xf32>,
    %c5 = arith.constant 5 : index
    %c0_39 = arith.constant 0 : index
    %c0_40 = arith.constant 0 : index
    %44 = vector.load %arg1[%c5, %c0_39, %c0_40] : memref<8x2x32xf32, #tpu.memory_space<vmem>>, vector<1x2x32xf32>
    %45 = vector.shape_cast %44 : vector<1x2x32xf32> to vector<2x32xf32>
    %cst_41 = arith.constant dense<0.000000e+00> : vector<2x128xf32>
    %46 = tpu.matmul %45, %0, %cst_41 {dimension_numbers = #tpu.dot_dimension_numbers<[1], [0], [0], [1], [0, 0, 1, 1], [], []>} : vector<2x32xf32>, vector<32x128xf32>, vector<2x128xf32> -> vector<2x128xf32>
    %47 = arith.addf %46, %5 : vector<2x128xf32>
    %c5_42 = arith.constant 5 : index
    %c0_43 = arith.constant 0 : index
    %c0_44 = arith.constant 0 : index
    %48 = vector.load %arg8[%c5_42, %c0_43, %c0_44] : memref<8x2x128xf32, #tpu.memory_space<vmem>>, vector<1x2x128xf32>
    %49 = vector.shape_cast %48 : vector<1x2x128xf32> to vector<2x128xf32>
    %50 = vector.shape_cast %47 : vector<2x128xf32> to vector<1x2x128xf32>
    tpu.vector_store %arg8[%c5_42, %c0_43, %c0_44], %50 {strides = array<i32>} : memref<8x2x128xf32, #tpu.memory_space<vmem>>, vector<1x2x128xf32>,
    %c6 = arith.constant 6 : index
    %c0_45 = arith.constant 0 : index
    %c0_46 = arith.constant 0 : index
    %51 = vector.load %arg1[%c6, %c0_45, %c0_46] : memref<8x2x32xf32, #tpu.memory_space<vmem>>, vector<1x2x32xf32>
    %52 = vector.shape_cast %51 : vector<1x2x32xf32> to vector<2x32xf32>
    %cst_47 = arith.constant dense<0.000000e+00> : vector<2x128xf32>
    %53 = tpu.matmul %52, %0, %cst_47 {dimension_numbers = #tpu.dot_dimension_numbers<[1], [0], [0], [1], [0, 0, 1, 1], [], []>} : vector<2x32xf32>, vector<32x128xf32>, vector<2x128xf32> -> vector<2x128xf32>
    %54 = arith.addf %53, %5 : vector<2x128xf32>
    %c6_48 = arith.constant 6 : index
    %c0_49 = arith.constant 0 : index
    %c0_50 = arith.constant 0 : index
    %55 = vector.load %arg8[%c6_48, %c0_49, %c0_50] : memref<8x2x128xf32, #tpu.memory_space<vmem>>, vector<1x2x128xf32>
    %56 = vector.shape_cast %55 : vector<1x2x128xf32> to vector<2x128xf32>
    %57 = vector.shape_cast %54 : vector<2x128xf32> to vector<1x2x128xf32>
    tpu.vector_store %arg8[%c6_48, %c0_49, %c0_50], %57 {strides = array<i32>} : memref<8x2x128xf32, #tpu.memory_space<vmem>>, vector<1x2x128xf32>,
    %c7 = arith.constant 7 : index
    %c0_51 = arith.constant 0 : index
    %c0_52 = arith.constant 0 : index
    %58 = vector.load %arg1[%c7, %c0_51, %c0_52] : memref<8x2x32xf32, #tpu.memory_space<vmem>>, vector<1x2x32xf32>
    %59 = vector.shape_cast %58 : vector<1x2x32xf32> to vector<2x32xf32>
    %cst_53 = arith.constant dense<0.000000e+00> : vector<2x128xf32>
    %60 = tpu.matmul %59, %0, %cst_53 {dimension_numbers = #tpu.dot_dimension_numbers<[1], [0], [0], [1], [0, 0, 1, 1], [], []>} : vector<2x32xf32>, vector<32x128xf32>, vector<2x128xf32> -> vector<2x128xf32>
    %61 = arith.addf %60, %5 : vector<2x128xf32>
    %c7_54 = arith.constant 7 : index
    %c0_55 = arith.constant 0 : index
    %c0_56 = arith.constant 0 : index
    %62 = vector.load %arg8[%c7_54, %c0_55, %c0_56] : memref<8x2x128xf32, #tpu.memory_space<vmem>>, vector<1x2x128xf32>
    %63 = vector.shape_cast %62 : vector<1x2x128xf32> to vector<2x128xf32>
    %64 = vector.shape_cast %61 : vector<2x128xf32> to vector<1x2x128xf32>
    tpu.vector_store %arg8[%c7_54, %c0_55, %c0_56], %64 {strides = array<i32>} : memref<8x2x128xf32, #tpu.memory_space<vmem>>, vector<1x2x128xf32>,
    %cst_57 = arith.constant 0.000000e+00 : f32
    %65 = vector.broadcast %cst_57 : f32 to vector<2x32xf32>
    %cst_58 = arith.constant 0.000000e+00 : f32
    %66 = vector.broadcast %cst_58 : f32 to vector<2x32xf32>
    %c0_i32 = arith.constant 0 : i32
    %67 = arith.index_cast %c0_i32 : i32 to index
    %c0_59 = arith.constant 0 : index
    %c0_60 = arith.constant 0 : index
    %68 = vector.load %arg8[%67, %c0_59, %c0_60] : memref<8x2x128xf32, #tpu.memory_space<vmem>>, vector<1x2x128xf32>
    %69 = vector.shape_cast %68 : vector<1x2x128xf32> to vector<2x128xf32>
    %cst_61 = arith.constant dense<0.000000e+00> : vector<2x128xf32>
    %70 = tpu.matmul %65, %1, %cst_61 {dimension_numbers = #tpu.dot_dimension_numbers<[1], [0], [0], [1], [0, 0, 1, 1], [], []>} : vector<2x32xf32>, vector<32x128xf32>, vector<2x128xf32> -> vector<2x128xf32>
    %71 = arith.addf %69, %70 : vector<2x128xf32>
    %72 = vector.extract_strided_slice %71 {offsets = [0, 0], sizes = [2, 96], strides = [1, 1]} : vector<2x128xf32> to vector<2x96xf32>
    %73 = arith.negf %72 : vector<2x96xf32>
    %74 = math.exp %73 : vector<2x96xf32>
    %cst_62 = arith.constant 1.000000e+00 : f32
    %75 = vector.broadcast %cst_62 : f32 to vector<2x96xf32>
    %76 = arith.addf %75, %74 : vector<2x96xf32>
    %77 = arith.divf %75, %76 : vector<2x96xf32>
    %78 = vector.extract_strided_slice %71 {offsets = [0, 96], sizes = [2, 32], strides = [1, 1]} : vector<2x128xf32> to vector<2x32xf32>
    %79 = math.tanh %78 : vector<2x32xf32>
    %80 = vector.extract_strided_slice %77 {offsets = [0, 0], sizes = [2, 32], strides = [1, 1]} : vector<2x96xf32> to vector<2x32xf32>
    %81 = vector.extract_strided_slice %77 {offsets = [0, 32], sizes = [2, 32], strides = [1, 1]} : vector<2x96xf32> to vector<2x32xf32>
    %82 = vector.extract_strided_slice %77 {offsets = [0, 64], sizes = [2, 32], strides = [1, 1]} : vector<2x96xf32> to vector<2x32xf32>
    %83 = arith.mulf %81, %66 : vector<2x32xf32>
    %84 = arith.mulf %80, %79 : vector<2x32xf32>
    %85 = arith.addf %83, %84 : vector<2x32xf32>
    %86 = math.tanh %85 : vector<2x32xf32>
    %87 = arith.mulf %82, %86 : vector<2x32xf32>
    %88 = arith.index_cast %c0_i32 : i32 to index
    %c0_63 = arith.constant 0 : index
    %c0_64 = arith.constant 0 : index
    %89 = vector.load %arg9[%88, %c0_63, %c0_64] : memref<8x2x32xf32, #tpu.memory_space<vmem>>, vector<1x2x32xf32>
    %90 = vector.shape_cast %89 : vector<1x2x32xf32> to vector<2x32xf32>
    %91 = vector.shape_cast %87 : vector<2x32xf32> to vector<1x2x32xf32>
    tpu.vector_store %arg9[%88, %c0_63, %c0_64], %91 {strides = array<i32>} : memref<8x2x32xf32, #tpu.memory_space<vmem>>, vector<1x2x32xf32>,
    %c1_i32 = arith.constant 1 : i32
    %92 = arith.index_cast %c1_i32 : i32 to index
    %c0_65 = arith.constant 0 : index
    %c0_66 = arith.constant 0 : index
    %93 = vector.load %arg8[%92, %c0_65, %c0_66] : memref<8x2x128xf32, #tpu.memory_space<vmem>>, vector<1x2x128xf32>
    %94 = vector.shape_cast %93 : vector<1x2x128xf32> to vector<2x128xf32>
    %cst_67 = arith.constant dense<0.000000e+00> : vector<2x128xf32>
    %95 = tpu.matmul %87, %1, %cst_67 {dimension_numbers = #tpu.dot_dimension_numbers<[1], [0], [0], [1], [0, 0, 1, 1], [], []>} : vector<2x32xf32>, vector<32x128xf32>, vector<2x128xf32> -> vector<2x128xf32>
    %96 = arith.addf %94, %95 : vector<2x128xf32>
    %97 = vector.extract_strided_slice %96 {offsets = [0, 0], sizes = [2, 96], strides = [1, 1]} : vector<2x128xf32> to vector<2x96xf32>
    %98 = arith.negf %97 : vector<2x96xf32>
    %99 = math.exp %98 : vector<2x96xf32>
    %cst_68 = arith.constant 1.000000e+00 : f32
    %100 = vector.broadcast %cst_68 : f32 to vector<2x96xf32>
    %101 = arith.addf %100, %99 : vector<2x96xf32>
    %102 = arith.divf %100, %101 : vector<2x96xf32>
    %103 = vector.extract_strided_slice %96 {offsets = [0, 96], sizes = [2, 32], strides = [1, 1]} : vector<2x128xf32> to vector<2x32xf32>
    %104 = math.tanh %103 : vector<2x32xf32>
    %105 = vector.extract_strided_slice %102 {offsets = [0, 0], sizes = [2, 32], strides = [1, 1]} : vector<2x96xf32> to vector<2x32xf32>
    %106 = vector.extract_strided_slice %102 {offsets = [0, 32], sizes = [2, 32], strides = [1, 1]} : vector<2x96xf32> to vector<2x32xf32>
    %107 = vector.extract_strided_slice %102 {offsets = [0, 64], sizes = [2, 32], strides = [1, 1]} : vector<2x96xf32> to vector<2x32xf32>
    %108 = arith.mulf %106, %85 : vector<2x32xf32>
    %109 = arith.mulf %105, %104 : vector<2x32xf32>
    %110 = arith.addf %108, %109 : vector<2x32xf32>
    %111 = math.tanh %110 : vector<2x32xf32>
    %112 = arith.mulf %107, %111 : vector<2x32xf32>
    %113 = arith.index_cast %c1_i32 : i32 to index
    %c0_69 = arith.constant 0 : index
    %c0_70 = arith.constant 0 : index
    %114 = vector.load %arg9[%113, %c0_69, %c0_70] : memref<8x2x32xf32, #tpu.memory_space<vmem>>, vector<1x2x32xf32>
    %115 = vector.shape_cast %114 : vector<1x2x32xf32> to vector<2x32xf32>
    %116 = vector.shape_cast %112 : vector<2x32xf32> to vector<1x2x32xf32>
    tpu.vector_store %arg9[%113, %c0_69, %c0_70], %116 {strides = array<i32>} : memref<8x2x32xf32, #tpu.memory_space<vmem>>, vector<1x2x32xf32>,
    %c2_i32 = arith.constant 2 : i32
    %117 = arith.index_cast %c2_i32 : i32 to index
    %c0_71 = arith.constant 0 : index
    %c0_72 = arith.constant 0 : index
    %118 = vector.load %arg8[%117, %c0_71, %c0_72] : memref<8x2x128xf32, #tpu.memory_space<vmem>>, vector<1x2x128xf32>
    %119 = vector.shape_cast %118 : vector<1x2x128xf32> to vector<2x128xf32>
    %cst_73 = arith.constant dense<0.000000e+00> : vector<2x128xf32>
    %120 = tpu.matmul %112, %1, %cst_73 {dimension_numbers = #tpu.dot_dimension_numbers<[1], [0], [0], [1], [0, 0, 1, 1], [], []>} : vector<2x32xf32>, vector<32x128xf32>, vector<2x128xf32> -> vector<2x128xf32>
    %121 = arith.addf %119, %120 : vector<2x128xf32>
    %122 = vector.extract_strided_slice %121 {offsets = [0, 0], sizes = [2, 96], strides = [1, 1]} : vector<2x128xf32> to vector<2x96xf32>
    %123 = arith.negf %122 : vector<2x96xf32>
    %124 = math.exp %123 : vector<2x96xf32>
    %cst_74 = arith.constant 1.000000e+00 : f32
    %125 = vector.broadcast %cst_74 : f32 to vector<2x96xf32>
    %126 = arith.addf %125, %124 : vector<2x96xf32>
    %127 = arith.divf %125, %126 : vector<2x96xf32>
    %128 = vector.extract_strided_slice %121 {offsets = [0, 96], sizes = [2, 32], strides = [1, 1]} : vector<2x128xf32> to vector<2x32xf32>
    %129 = math.tanh %128 : vector<2x32xf32>
    %130 = vector.extract_strided_slice %127 {offsets = [0, 0], sizes = [2, 32], strides = [1, 1]} : vector<2x96xf32> to vector<2x32xf32>
    %131 = vector.extract_strided_slice %127 {offsets = [0, 32], sizes = [2, 32], strides = [1, 1]} : vector<2x96xf32> to vector<2x32xf32>
    %132 = vector.extract_strided_slice %127 {offsets = [0, 64], sizes = [2, 32], strides = [1, 1]} : vector<2x96xf32> to vector<2x32xf32>
    %133 = arith.mulf %131, %110 : vector<2x32xf32>
    %134 = arith.mulf %130, %129 : vector<2x32xf32>
    %135 = arith.addf %133, %134 : vector<2x32xf32>
    %136 = math.tanh %135 : vector<2x32xf32>
    %137 = arith.mulf %132, %136 : vector<2x32xf32>
    %138 = arith.index_cast %c2_i32 : i32 to index
    %c0_75 = arith.constant 0 : index
    %c0_76 = arith.constant 0 : index
    %139 = vector.load %arg9[%138, %c0_75, %c0_76] : memref<8x2x32xf32, #tpu.memory_space<vmem>>, vector<1x2x32xf32>
    %140 = vector.shape_cast %139 : vector<1x2x32xf32> to vector<2x32xf32>
    %141 = vector.shape_cast %137 : vector<2x32xf32> to vector<1x2x32xf32>
    tpu.vector_store %arg9[%138, %c0_75, %c0_76], %141 {strides = array<i32>} : memref<8x2x32xf32, #tpu.memory_space<vmem>>, vector<1x2x32xf32>,
    %c3_i32 = arith.constant 3 : i32
    %142 = arith.index_cast %c3_i32 : i32 to index
    %c0_77 = arith.constant 0 : index
    %c0_78 = arith.constant 0 : index
    %143 = vector.load %arg8[%142, %c0_77, %c0_78] : memref<8x2x128xf32, #tpu.memory_space<vmem>>, vector<1x2x128xf32>
    %144 = vector.shape_cast %143 : vector<1x2x128xf32> to vector<2x128xf32>
    %cst_79 = arith.constant dense<0.000000e+00> : vector<2x128xf32>
    %145 = tpu.matmul %137, %1, %cst_79 {dimension_numbers = #tpu.dot_dimension_numbers<[1], [0], [0], [1], [0, 0, 1, 1], [], []>} : vector<2x32xf32>, vector<32x128xf32>, vector<2x128xf32> -> vector<2x128xf32>
    %146 = arith.addf %144, %145 : vector<2x128xf32>
    %147 = vector.extract_strided_slice %146 {offsets = [0, 0], sizes = [2, 96], strides = [1, 1]} : vector<2x128xf32> to vector<2x96xf32>
    %148 = arith.negf %147 : vector<2x96xf32>
    %149 = math.exp %148 : vector<2x96xf32>
    %cst_80 = arith.constant 1.000000e+00 : f32
    %150 = vector.broadcast %cst_80 : f32 to vector<2x96xf32>
    %151 = arith.addf %150, %149 : vector<2x96xf32>
    %152 = arith.divf %150, %151 : vector<2x96xf32>
    %153 = vector.extract_strided_slice %146 {offsets = [0, 96], sizes = [2, 32], strides = [1, 1]} : vector<2x128xf32> to vector<2x32xf32>
    %154 = math.tanh %153 : vector<2x32xf32>
    %155 = vector.extract_strided_slice %152 {offsets = [0, 0], sizes = [2, 32], strides = [1, 1]} : vector<2x96xf32> to vector<2x32xf32>
    %156 = vector.extract_strided_slice %152 {offsets = [0, 32], sizes = [2, 32], strides = [1, 1]} : vector<2x96xf32> to vector<2x32xf32>
    %157 = vector.extract_strided_slice %152 {offsets = [0, 64], sizes = [2, 32], strides = [1, 1]} : vector<2x96xf32> to vector<2x32xf32>
    %158 = arith.mulf %156, %135 : vector<2x32xf32>
    %159 = arith.mulf %155, %154 : vector<2x32xf32>
    %160 = arith.addf %158, %159 : vector<2x32xf32>
    %161 = math.tanh %160 : vector<2x32xf32>
    %162 = arith.mulf %157, %161 : vector<2x32xf32>
    %163 = arith.index_cast %c3_i32 : i32 to index
    %c0_81 = arith.constant 0 : index
    %c0_82 = arith.constant 0 : index
    %164 = vector.load %arg9[%163, %c0_81, %c0_82] : memref<8x2x32xf32, #tpu.memory_space<vmem>>, vector<1x2x32xf32>
    %165 = vector.shape_cast %164 : vector<1x2x32xf32> to vector<2x32xf32>
    %166 = vector.shape_cast %162 : vector<2x32xf32> to vector<1x2x32xf32>
    tpu.vector_store %arg9[%163, %c0_81, %c0_82], %166 {strides = array<i32>} : memref<8x2x32xf32, #tpu.memory_space<vmem>>, vector<1x2x32xf32>,
    %c4_i32 = arith.constant 4 : i32
    %167 = arith.index_cast %c4_i32 : i32 to index
    %c0_83 = arith.constant 0 : index
    %c0_84 = arith.constant 0 : index
    %168 = vector.load %arg8[%167, %c0_83, %c0_84] : memref<8x2x128xf32, #tpu.memory_space<vmem>>, vector<1x2x128xf32>
    %169 = vector.shape_cast %168 : vector<1x2x128xf32> to vector<2x128xf32>
    %cst_85 = arith.constant dense<0.000000e+00> : vector<2x128xf32>
    %170 = tpu.matmul %162, %1, %cst_85 {dimension_numbers = #tpu.dot_dimension_numbers<[1], [0], [0], [1], [0, 0, 1, 1], [], []>} : vector<2x32xf32>, vector<32x128xf32>, vector<2x128xf32> -> vector<2x128xf32>
    %171 = arith.addf %169, %170 : vector<2x128xf32>
    %172 = vector.extract_strided_slice %171 {offsets = [0, 0], sizes = [2, 96], strides = [1, 1]} : vector<2x128xf32> to vector<2x96xf32>
    %173 = arith.negf %172 : vector<2x96xf32>
    %174 = math.exp %173 : vector<2x96xf32>
    %cst_86 = arith.constant 1.000000e+00 : f32
    %175 = vector.broadcast %cst_86 : f32 to vector<2x96xf32>
    %176 = arith.addf %175, %174 : vector<2x96xf32>
    %177 = arith.divf %175, %176 : vector<2x96xf32>
    %178 = vector.extract_strided_slice %171 {offsets = [0, 96], sizes = [2, 32], strides = [1, 1]} : vector<2x128xf32> to vector<2x32xf32>
    %179 = math.tanh %178 : vector<2x32xf32>
    %180 = vector.extract_strided_slice %177 {offsets = [0, 0], sizes = [2, 32], strides = [1, 1]} : vector<2x96xf32> to vector<2x32xf32>
    %181 = vector.extract_strided_slice %177 {offsets = [0, 32], sizes = [2, 32], strides = [1, 1]} : vector<2x96xf32> to vector<2x32xf32>
    %182 = vector.extract_strided_slice %177 {offsets = [0, 64], sizes = [2, 32], strides = [1, 1]} : vector<2x96xf32> to vector<2x32xf32>
    %183 = arith.mulf %181, %160 : vector<2x32xf32>
    %184 = arith.mulf %180, %179 : vector<2x32xf32>
    %185 = arith.addf %183, %184 : vector<2x32xf32>
    %186 = math.tanh %185 : vector<2x32xf32>
    %187 = arith.mulf %182, %186 : vector<2x32xf32>
    %188 = arith.index_cast %c4_i32 : i32 to index
    %c0_87 = arith.constant 0 : index
    %c0_88 = arith.constant 0 : index
    %189 = vector.load %arg9[%188, %c0_87, %c0_88] : memref<8x2x32xf32, #tpu.memory_space<vmem>>, vector<1x2x32xf32>
    %190 = vector.shape_cast %189 : vector<1x2x32xf32> to vector<2x32xf32>
    %191 = vector.shape_cast %187 : vector<2x32xf32> to vector<1x2x32xf32>
    tpu.vector_store %arg9[%188, %c0_87, %c0_88], %191 {strides = array<i32>} : memref<8x2x32xf32, #tpu.memory_space<vmem>>, vector<1x2x32xf32>,
    %c5_i32 = arith.constant 5 : i32
    %192 = arith.index_cast %c5_i32 : i32 to index
    %c0_89 = arith.constant 0 : index
    %c0_90 = arith.constant 0 : index
    %193 = vector.load %arg8[%192, %c0_89, %c0_90] : memref<8x2x128xf32, #tpu.memory_space<vmem>>, vector<1x2x128xf32>
    %194 = vector.shape_cast %193 : vector<1x2x128xf32> to vector<2x128xf32>
    %cst_91 = arith.constant dense<0.000000e+00> : vector<2x128xf32>
    %195 = tpu.matmul %187, %1, %cst_91 {dimension_numbers = #tpu.dot_dimension_numbers<[1], [0], [0], [1], [0, 0, 1, 1], [], []>} : vector<2x32xf32>, vector<32x128xf32>, vector<2x128xf32> -> vector<2x128xf32>
    %196 = arith.addf %194, %195 : vector<2x128xf32>
    %197 = vector.extract_strided_slice %196 {offsets = [0, 0], sizes = [2, 96], strides = [1, 1]} : vector<2x128xf32> to vector<2x96xf32>
    %198 = arith.negf %197 : vector<2x96xf32>
    %199 = math.exp %198 : vector<2x96xf32>
    %cst_92 = arith.constant 1.000000e+00 : f32
    %200 = vector.broadcast %cst_92 : f32 to vector<2x96xf32>
    %201 = arith.addf %200, %199 : vector<2x96xf32>
    %202 = arith.divf %200, %201 : vector<2x96xf32>
    %203 = vector.extract_strided_slice %196 {offsets = [0, 96], sizes = [2, 32], strides = [1, 1]} : vector<2x128xf32> to vector<2x32xf32>
    %204 = math.tanh %203 : vector<2x32xf32>
    %205 = vector.extract_strided_slice %202 {offsets = [0, 0], sizes = [2, 32], strides = [1, 1]} : vector<2x96xf32> to vector<2x32xf32>
    %206 = vector.extract_strided_slice %202 {offsets = [0, 32], sizes = [2, 32], strides = [1, 1]} : vector<2x96xf32> to vector<2x32xf32>
    %207 = vector.extract_strided_slice %202 {offsets = [0, 64], sizes = [2, 32], strides = [1, 1]} : vector<2x96xf32> to vector<2x32xf32>
    %208 = arith.mulf %206, %185 : vector<2x32xf32>
    %209 = arith.mulf %205, %204 : vector<2x32xf32>
    %210 = arith.addf %208, %209 : vector<2x32xf32>
    %211 = math.tanh %210 : vector<2x32xf32>
    %212 = arith.mulf %207, %211 : vector<2x32xf32>
    %213 = arith.index_cast %c5_i32 : i32 to index
    %c0_93 = arith.constant 0 : index
    %c0_94 = arith.constant 0 : index
    %214 = vector.load %arg9[%213, %c0_93, %c0_94] : memref<8x2x32xf32, #tpu.memory_space<vmem>>, vector<1x2x32xf32>
    %215 = vector.shape_cast %214 : vector<1x2x32xf32> to vector<2x32xf32>
    %216 = vector.shape_cast %212 : vector<2x32xf32> to vector<1x2x32xf32>
    tpu.vector_store %arg9[%213, %c0_93, %c0_94], %216 {strides = array<i32>} : memref<8x2x32xf32, #tpu.memory_space<vmem>>, vector<1x2x32xf32>,
    %c6_i32 = arith.constant 6 : i32
    %217 = arith.index_cast %c6_i32 : i32 to index
    %c0_95 = arith.constant 0 : index
    %c0_96 = arith.constant 0 : index
    %218 = vector.load %arg8[%217, %c0_95, %c0_96] : memref<8x2x128xf32, #tpu.memory_space<vmem>>, vector<1x2x128xf32>
    %219 = vector.shape_cast %218 : vector<1x2x128xf32> to vector<2x128xf32>
    %cst_97 = arith.constant dense<0.000000e+00> : vector<2x128xf32>
    %220 = tpu.matmul %212, %1, %cst_97 {dimension_numbers = #tpu.dot_dimension_numbers<[1], [0], [0], [1], [0, 0, 1, 1], [], []>} : vector<2x32xf32>, vector<32x128xf32>, vector<2x128xf32> -> vector<2x128xf32>
    %221 = arith.addf %219, %220 : vector<2x128xf32>
    %222 = vector.extract_strided_slice %221 {offsets = [0, 0], sizes = [2, 96], strides = [1, 1]} : vector<2x128xf32> to vector<2x96xf32>
    %223 = arith.negf %222 : vector<2x96xf32>
    %224 = math.exp %223 : vector<2x96xf32>
    %cst_98 = arith.constant 1.000000e+00 : f32
    %225 = vector.broadcast %cst_98 : f32 to vector<2x96xf32>
    %226 = arith.addf %225, %224 : vector<2x96xf32>
    %227 = arith.divf %225, %226 : vector<2x96xf32>
    %228 = vector.extract_strided_slice %221 {offsets = [0, 96], sizes = [2, 32], strides = [1, 1]} : vector<2x128xf32> to vector<2x32xf32>
    %229 = math.tanh %228 : vector<2x32xf32>
    %230 = vector.extract_strided_slice %227 {offsets = [0, 0], sizes = [2, 32], strides = [1, 1]} : vector<2x96xf32> to vector<2x32xf32>
    %231 = vector.extract_strided_slice %227 {offsets = [0, 32], sizes = [2, 32], strides = [1, 1]} : vector<2x96xf32> to vector<2x32xf32>
    %232 = vector.extract_strided_slice %227 {offsets = [0, 64], sizes = [2, 32], strides = [1, 1]} : vector<2x96xf32> to vector<2x32xf32>
    %233 = arith.mulf %231, %210 : vector<2x32xf32>
    %234 = arith.mulf %230, %229 : vector<2x32xf32>
    %235 = arith.addf %233, %234 : vector<2x32xf32>
    %236 = math.tanh %235 : vector<2x32xf32>
    %237 = arith.mulf %232, %236 : vector<2x32xf32>
    %238 = arith.index_cast %c6_i32 : i32 to index
    %c0_99 = arith.constant 0 : index
    %c0_100 = arith.constant 0 : index
    %239 = vector.load %arg9[%238, %c0_99, %c0_100] : memref<8x2x32xf32, #tpu.memory_space<vmem>>, vector<1x2x32xf32>
    %240 = vector.shape_cast %239 : vector<1x2x32xf32> to vector<2x32xf32>
    %241 = vector.shape_cast %237 : vector<2x32xf32> to vector<1x2x32xf32>
    tpu.vector_store %arg9[%238, %c0_99, %c0_100], %241 {strides = array<i32>} : memref<8x2x32xf32, #tpu.memory_space<vmem>>, vector<1x2x32xf32>,
    %c7_i32 = arith.constant 7 : i32
    %242 = arith.index_cast %c7_i32 : i32 to index
    %c0_101 = arith.constant 0 : index
    %c0_102 = arith.constant 0 : index
    %243 = vector.load %arg8[%242, %c0_101, %c0_102] : memref<8x2x128xf32, #tpu.memory_space<vmem>>, vector<1x2x128xf32>
    %244 = vector.shape_cast %243 : vector<1x2x128xf32> to vector<2x128xf32>
    %cst_103 = arith.constant dense<0.000000e+00> : vector<2x128xf32>
    %245 = tpu.matmul %237, %1, %cst_103 {dimension_numbers = #tpu.dot_dimension_numbers<[1], [0], [0], [1], [0, 0, 1, 1], [], []>} : vector<2x32xf32>, vector<32x128xf32>, vector<2x128xf32> -> vector<2x128xf32>
    %246 = arith.addf %244, %245 : vector<2x128xf32>
    %247 = vector.extract_strided_slice %246 {offsets = [0, 0], sizes = [2, 96], strides = [1, 1]} : vector<2x128xf32> to vector<2x96xf32>
    %248 = arith.negf %247 : vector<2x96xf32>
    %249 = math.exp %248 : vector<2x96xf32>
    %cst_104 = arith.constant 1.000000e+00 : f32
    %250 = vector.broadcast %cst_104 : f32 to vector<2x96xf32>
    %251 = arith.addf %250, %249 : vector<2x96xf32>
    %252 = arith.divf %250, %251 : vector<2x96xf32>
    %253 = vector.extract_strided_slice %246 {offsets = [0, 96], sizes = [2, 32], strides = [1, 1]} : vector<2x128xf32> to vector<2x32xf32>
    %254 = math.tanh %253 : vector<2x32xf32>
    %255 = vector.extract_strided_slice %252 {offsets = [0, 0], sizes = [2, 32], strides = [1, 1]} : vector<2x96xf32> to vector<2x32xf32>
    %256 = vector.extract_strided_slice %252 {offsets = [0, 32], sizes = [2, 32], strides = [1, 1]} : vector<2x96xf32> to vector<2x32xf32>
    %257 = vector.extract_strided_slice %252 {offsets = [0, 64], sizes = [2, 32], strides = [1, 1]} : vector<2x96xf32> to vector<2x32xf32>
    %258 = arith.mulf %256, %235 : vector<2x32xf32>
    %259 = arith.mulf %255, %254 : vector<2x32xf32>
    %260 = arith.addf %258, %259 : vector<2x32xf32>
    %261 = math.tanh %260 : vector<2x32xf32>
    %262 = arith.mulf %257, %261 : vector<2x32xf32>
    %263 = arith.index_cast %c7_i32 : i32 to index
    %c0_105 = arith.constant 0 : index
    %c0_106 = arith.constant 0 : index
    %264 = vector.load %arg9[%263, %c0_105, %c0_106] : memref<8x2x32xf32, #tpu.memory_space<vmem>>, vector<1x2x32xf32>
    %265 = vector.shape_cast %264 : vector<1x2x32xf32> to vector<2x32xf32>
    %266 = vector.shape_cast %262 : vector<2x32xf32> to vector<1x2x32xf32>
    tpu.vector_store %arg9[%263, %c0_105, %c0_106], %266 {strides = array<i32>} : memref<8x2x32xf32, #tpu.memory_space<vmem>>, vector<1x2x32xf32>,
    %c8_i32 = arith.constant 8 : i32
    %c0_107 = arith.constant 0 : index
    %c0_108 = arith.constant 0 : index
    %c0_109 = arith.constant 0 : index
    %267 = vector.load %arg9[%c0_107, %c0_108, %c0_109] : memref<8x2x32xf32, #tpu.memory_space<vmem>>, vector<1x2x32xf32>
    %268 = vector.shape_cast %267 : vector<1x2x32xf32> to vector<2x32xf32>
    %cst_110 = arith.constant dense<0.000000e+00> : vector<2x2xf32>
    %269 = tpu.matmul %268, %2, %cst_110 {dimension_numbers = #tpu.dot_dimension_numbers<[1], [0], [0], [1], [0, 0, 1, 1], [], []>} : vector<2x32xf32>, vector<32x2xf32>, vector<2x2xf32> -> vector<2x2xf32>
    %270 = arith.addf %269, %8 : vector<2x2xf32>
    %c0_111 = arith.constant 0 : index
    %c0_112 = arith.constant 0 : index
    %c0_113 = arith.constant 0 : index
    %271 = vector.load %arg7[%c0_111, %c0_112, %c0_113] : memref<8x2x2xf32, #tpu.memory_space<vmem>>, vector<1x2x2xf32>
    %272 = vector.shape_cast %271 : vector<1x2x2xf32> to vector<2x2xf32>
    %273 = vector.shape_cast %270 : vector<2x2xf32> to vector<1x2x2xf32>
    tpu.vector_store %arg7[%c0_111, %c0_112, %c0_113], %273 {strides = array<i32>} : memref<8x2x2xf32, #tpu.memory_space<vmem>>, vector<1x2x2xf32>,
    %c1_114 = arith.constant 1 : index
    %c0_115 = arith.constant 0 : index
    %c0_116 = arith.constant 0 : index
    %274 = vector.load %arg9[%c1_114, %c0_115, %c0_116] : memref<8x2x32xf32, #tpu.memory_space<vmem>>, vector<1x2x32xf32>
    %275 = vector.shape_cast %274 : vector<1x2x32xf32> to vector<2x32xf32>
    %cst_117 = arith.constant dense<0.000000e+00> : vector<2x2xf32>
    %276 = tpu.matmul %275, %2, %cst_117 {dimension_numbers = #tpu.dot_dimension_numbers<[1], [0], [0], [1], [0, 0, 1, 1], [], []>} : vector<2x32xf32>, vector<32x2xf32>, vector<2x2xf32> -> vector<2x2xf32>
    %277 = arith.addf %276, %8 : vector<2x2xf32>
    %c1_118 = arith.constant 1 : index
    %c0_119 = arith.constant 0 : index
    %c0_120 = arith.constant 0 : index
    %278 = vector.load %arg7[%c1_118, %c0_119, %c0_120] : memref<8x2x2xf32, #tpu.memory_space<vmem>>, vector<1x2x2xf32>
    %279 = vector.shape_cast %278 : vector<1x2x2xf32> to vector<2x2xf32>
    %280 = vector.shape_cast %277 : vector<2x2xf32> to vector<1x2x2xf32>
    tpu.vector_store %arg7[%c1_118, %c0_119, %c0_120], %280 {strides = array<i32>} : memref<8x2x2xf32, #tpu.memory_space<vmem>>, vector<1x2x2xf32>,
    %c2_121 = arith.constant 2 : index
    %c0_122 = arith.constant 0 : index
    %c0_123 = arith.constant 0 : index
    %281 = vector.load %arg9[%c2_121, %c0_122, %c0_123] : memref<8x2x32xf32, #tpu.memory_space<vmem>>, vector<1x2x32xf32>
    %282 = vector.shape_cast %281 : vector<1x2x32xf32> to vector<2x32xf32>
    %cst_124 = arith.constant dense<0.000000e+00> : vector<2x2xf32>
    %283 = tpu.matmul %282, %2, %cst_124 {dimension_numbers = #tpu.dot_dimension_numbers<[1], [0], [0], [1], [0, 0, 1, 1], [], []>} : vector<2x32xf32>, vector<32x2xf32>, vector<2x2xf32> -> vector<2x2xf32>
    %284 = arith.addf %283, %8 : vector<2x2xf32>
    %c2_125 = arith.constant 2 : index
    %c0_126 = arith.constant 0 : index
    %c0_127 = arith.constant 0 : index
    %285 = vector.load %arg7[%c2_125, %c0_126, %c0_127] : memref<8x2x2xf32, #tpu.memory_space<vmem>>, vector<1x2x2xf32>
    %286 = vector.shape_cast %285 : vector<1x2x2xf32> to vector<2x2xf32>
    %287 = vector.shape_cast %284 : vector<2x2xf32> to vector<1x2x2xf32>
    tpu.vector_store %arg7[%c2_125, %c0_126, %c0_127], %287 {strides = array<i32>} : memref<8x2x2xf32, #tpu.memory_space<vmem>>, vector<1x2x2xf32>,
    %c3_128 = arith.constant 3 : index
    %c0_129 = arith.constant 0 : index
    %c0_130 = arith.constant 0 : index
    %288 = vector.load %arg9[%c3_128, %c0_129, %c0_130] : memref<8x2x32xf32, #tpu.memory_space<vmem>>, vector<1x2x32xf32>
    %289 = vector.shape_cast %288 : vector<1x2x32xf32> to vector<2x32xf32>
    %cst_131 = arith.constant dense<0.000000e+00> : vector<2x2xf32>
    %290 = tpu.matmul %289, %2, %cst_131 {dimension_numbers = #tpu.dot_dimension_numbers<[1], [0], [0], [1], [0, 0, 1, 1], [], []>} : vector<2x32xf32>, vector<32x2xf32>, vector<2x2xf32> -> vector<2x2xf32>
    %291 = arith.addf %290, %8 : vector<2x2xf32>
    %c3_132 = arith.constant 3 : index
    %c0_133 = arith.constant 0 : index
    %c0_134 = arith.constant 0 : index
    %292 = vector.load %arg7[%c3_132, %c0_133, %c0_134] : memref<8x2x2xf32, #tpu.memory_space<vmem>>, vector<1x2x2xf32>
    %293 = vector.shape_cast %292 : vector<1x2x2xf32> to vector<2x2xf32>
    %294 = vector.shape_cast %291 : vector<2x2xf32> to vector<1x2x2xf32>
    tpu.vector_store %arg7[%c3_132, %c0_133, %c0_134], %294 {strides = array<i32>} : memref<8x2x2xf32, #tpu.memory_space<vmem>>, vector<1x2x2xf32>,
    %c4_135 = arith.constant 4 : index
    %c0_136 = arith.constant 0 : index
    %c0_137 = arith.constant 0 : index
    %295 = vector.load %arg9[%c4_135, %c0_136, %c0_137] : memref<8x2x32xf32, #tpu.memory_space<vmem>>, vector<1x2x32xf32>
    %296 = vector.shape_cast %295 : vector<1x2x32xf32> to vector<2x32xf32>
    %cst_138 = arith.constant dense<0.000000e+00> : vector<2x2xf32>
    %297 = tpu.matmul %296, %2, %cst_138 {dimension_numbers = #tpu.dot_dimension_numbers<[1], [0], [0], [1], [0, 0, 1, 1], [], []>} : vector<2x32xf32>, vector<32x2xf32>, vector<2x2xf32> -> vector<2x2xf32>
    %298 = arith.addf %297, %8 : vector<2x2xf32>
    %c4_139 = arith.constant 4 : index
    %c0_140 = arith.constant 0 : index
    %c0_141 = arith.constant 0 : index
    %299 = vector.load %arg7[%c4_139, %c0_140, %c0_141] : memref<8x2x2xf32, #tpu.memory_space<vmem>>, vector<1x2x2xf32>
    %300 = vector.shape_cast %299 : vector<1x2x2xf32> to vector<2x2xf32>
    %301 = vector.shape_cast %298 : vector<2x2xf32> to vector<1x2x2xf32>
    tpu.vector_store %arg7[%c4_139, %c0_140, %c0_141], %301 {strides = array<i32>} : memref<8x2x2xf32, #tpu.memory_space<vmem>>, vector<1x2x2xf32>,
    %c5_142 = arith.constant 5 : index
    %c0_143 = arith.constant 0 : index
    %c0_144 = arith.constant 0 : index
    %302 = vector.load %arg9[%c5_142, %c0_143, %c0_144] : memref<8x2x32xf32, #tpu.memory_space<vmem>>, vector<1x2x32xf32>
    %303 = vector.shape_cast %302 : vector<1x2x32xf32> to vector<2x32xf32>
    %cst_145 = arith.constant dense<0.000000e+00> : vector<2x2xf32>
    %304 = tpu.matmul %303, %2, %cst_145 {dimension_numbers = #tpu.dot_dimension_numbers<[1], [0], [0], [1], [0, 0, 1, 1], [], []>} : vector<2x32xf32>, vector<32x2xf32>, vector<2x2xf32> -> vector<2x2xf32>
    %305 = arith.addf %304, %8 : vector<2x2xf32>
    %c5_146 = arith.constant 5 : index
    %c0_147 = arith.constant 0 : index
    %c0_148 = arith.constant 0 : index
    %306 = vector.load %arg7[%c5_146, %c0_147, %c0_148] : memref<8x2x2xf32, #tpu.memory_space<vmem>>, vector<1x2x2xf32>
    %307 = vector.shape_cast %306 : vector<1x2x2xf32> to vector<2x2xf32>
    %308 = vector.shape_cast %305 : vector<2x2xf32> to vector<1x2x2xf32>
    tpu.vector_store %arg7[%c5_146, %c0_147, %c0_148], %308 {strides = array<i32>} : memref<8x2x2xf32, #tpu.memory_space<vmem>>, vector<1x2x2xf32>,
    %c6_149 = arith.constant 6 : index
    %c0_150 = arith.constant 0 : index
    %c0_151 = arith.constant 0 : index
    %309 = vector.load %arg9[%c6_149, %c0_150, %c0_151] : memref<8x2x32xf32, #tpu.memory_space<vmem>>, vector<1x2x32xf32>
    %310 = vector.shape_cast %309 : vector<1x2x32xf32> to vector<2x32xf32>
    %cst_152 = arith.constant dense<0.000000e+00> : vector<2x2xf32>
    %311 = tpu.matmul %310, %2, %cst_152 {dimension_numbers = #tpu.dot_dimension_numbers<[1], [0], [0], [1], [0, 0, 1, 1], [], []>} : vector<2x32xf32>, vector<32x2xf32>, vector<2x2xf32> -> vector<2x2xf32>
    %312 = arith.addf %311, %8 : vector<2x2xf32>
    %c6_153 = arith.constant 6 : index
    %c0_154 = arith.constant 0 : index
    %c0_155 = arith.constant 0 : index
    %313 = vector.load %arg7[%c6_153, %c0_154, %c0_155] : memref<8x2x2xf32, #tpu.memory_space<vmem>>, vector<1x2x2xf32>
    %314 = vector.shape_cast %313 : vector<1x2x2xf32> to vector<2x2xf32>
    %315 = vector.shape_cast %312 : vector<2x2xf32> to vector<1x2x2xf32>
    tpu.vector_store %arg7[%c6_153, %c0_154, %c0_155], %315 {strides = array<i32>} : memref<8x2x2xf32, #tpu.memory_space<vmem>>, vector<1x2x2xf32>,
    %c7_156 = arith.constant 7 : index
    %c0_157 = arith.constant 0 : index
    %c0_158 = arith.constant 0 : index
    %316 = vector.load %arg9[%c7_156, %c0_157, %c0_158] : memref<8x2x32xf32, #tpu.memory_space<vmem>>, vector<1x2x32xf32>
    %317 = vector.shape_cast %316 : vector<1x2x32xf32> to vector<2x32xf32>
    %cst_159 = arith.constant dense<0.000000e+00> : vector<2x2xf32>
    %318 = tpu.matmul %317, %2, %cst_159 {dimension_numbers = #tpu.dot_dimension_numbers<[1], [0], [0], [1], [0, 0, 1, 1], [], []>} : vector<2x32xf32>, vector<32x2xf32>, vector<2x2xf32> -> vector<2x2xf32>
    %319 = arith.addf %318, %8 : vector<2x2xf32>
    %c7_160 = arith.constant 7 : index
    %c0_161 = arith.constant 0 : index
    %c0_162 = arith.constant 0 : index
    %320 = vector.load %arg7[%c7_160, %c0_161, %c0_162] : memref<8x2x2xf32, #tpu.memory_space<vmem>>, vector<1x2x2xf32>
    %321 = vector.shape_cast %320 : vector<1x2x2xf32> to vector<2x2xf32>
    %322 = vector.shape_cast %319 : vector<2x2xf32> to vector<1x2x2xf32>
    tpu.vector_store %arg7[%c7_160, %c0_161, %c0_162], %322 {strides = array<i32>} : memref<8x2x2xf32, #tpu.memory_space<vmem>>, vector<1x2x2xf32>,
    return
  }
  func.func @transform_0(%arg0: i32) -> (i32, i32, i32) {
    %c0_i32 = arith.constant 0 : i32
    %c0_i32_0 = arith.constant 0 : i32
    %c0_i32_1 = arith.constant 0 : i32
    return %c0_i32, %arg0, %c0_i32_0 : i32, i32, i32
  }
  func.func @transform_1(%arg0: i32) -> (i32, i32) {
    %c0_i32 = arith.constant 0 : i32
    %c0_i32_0 = arith.constant 0 : i32
    %c0_i32_1 = arith.constant 0 : i32
    return %c0_i32, %c0_i32_0 : i32, i32
  }
  func.func @transform_2(%arg0: i32) -> (i32, i32) {
    %c0_i32 = arith.constant 0 : i32
    %c0_i32_0 = arith.constant 0 : i32
    %c0_i32_1 = arith.constant 0 : i32
    return %c0_i32, %c0_i32_0 : i32, i32
  }
  func.func @transform_3(%arg0: i32) -> (i32, i32) {
    %c0_i32 = arith.constant 0 : i32
    %c0_i32_0 = arith.constant 0 : i32
    %c0_i32_1 = arith.constant 0 : i32
    return %c0_i32, %c0_i32_0 : i32, i32
  }
  func.func @transform_4(%arg0: i32) -> (i32, i32) {
    %c0_i32 = arith.constant 0 : i32
    %c0_i32_0 = arith.constant 0 : i32
    %c0_i32_1 = arith.constant 0 : i32
    return %c0_i32, %c0_i32_0 : i32, i32
  }
  func.func @transform_5(%arg0: i32) -> (i32, i32) {
    %c0_i32 = arith.constant 0 : i32
    %c0_i32_0 = arith.constant 0 : i32
    %c0_i32_1 = arith.constant 0 : i32
    return %c0_i32, %c0_i32_0 : i32, i32
  }
  func.func @transform_6(%arg0: i32) -> (i32, i32, i32) {
    %c0_i32 = arith.constant 0 : i32
    %c0_i32_0 = arith.constant 0 : i32
    %c0_i32_1 = arith.constant 0 : i32
    return %c0_i32, %arg0, %c0_i32_0 : i32, i32, i32
  }
}

</mosaic_0001>

<llo_original>
// kernel: tpu_custom_call.1
$region0: #{tpu_custom_call.1}
  #allocation0 [shape = 'u32[]', space=smem, size = 0x4, offset = 0x4, fixed_abs, tag = 'smem constant byte address 0x4 - core index']
  #allocation1 [shape = 'u32[144,128]{1,0:T(1,128)}', space=vmem, size = 0x12000, scoped, tag = 'internal scratch']
  #allocation2 [shape = 'f32[8,2,128]{2,1,0:T(2,128)}', space=vmem, size = 0x2000, scoped, tag = 'scratch operand']
  #allocation3 [shape = 'f32[8,2,32]{2,1,0:T(2,128)}', space=vmem, size = 0x2000, scoped, tag = 'scratch operand']
  %s0 = inlined_call_operand.hbm [shape: f32[8,2,32], index: 0, kind: input, shape index: {}]
  %s1 = inlined_call_operand.vmem [shape: f32[32,128], index: 1, kind: input, shape index: {}]
  %s2 = inlined_call_operand.hbm [shape: f32[32,128], index: 2, kind: input, shape index: {}]
  %s3 = inlined_call_operand.vmem [shape: f32[1,128], index: 3, kind: input, shape index: {}]
  %s4 = inlined_call_operand.vmem [shape: f32[32,2], index: 4, kind: input, shape index: {}]
  %s5 = inlined_call_operand.vmem [shape: f32[1,2], index: 5, kind: input, shape index: {}]
  %s6 = inlined_call_operand.vmem [shape: f32[8,2,2], index: 6, kind: output, shape index: {}]
  %s7 = sld [smem:[#allocation0]]
  $region42: #{tpu_custom_call.1} parent=0
    _
  %s9 = ssub.s32 1, %s7
  %s10 = scalar_select 0, %s9, %s7
  $region1: #{tpu_custom_call.1} parent=0
    #allocation4 [shape = 'u8[8192]{0}', space=vmem, size = 0x2000, scoped, tag = 'input window, operand 0, single buffered']
    #allocation5 [shape = 's32[1]{0}', space=sflag, size = 0x4, scoped, tag = 'scoped memory for tpu_custom_call.1']
    #allocation6 [shape = 'u8[16384]{0}', space=vmem, size = 0x4000, scoped, tag = 'input window, operand 2, single buffered']
    #allocation7 [shape = 's32[1]{0}', space=sflag, size = 0x4, scoped, tag = 'scoped memory for tpu_custom_call.1']
    %11 = vsyncpa [#allocation5], 0
    %12 = vsyncpa [#allocation7], 0
    // Predicated region
    $region2: #{tpu_custom_call.1} parent=1 // pred_check
      _
    $region3: #{tpu_custom_call.1} parent=1 // pred_check_branch
      %14 = sbr.rel (0) target = $region5
    $region4: #{tpu_custom_call.1} parent=1 // pred_region
      %s16 = ssub.s32 256, 256
      %17 = vsyncadd [#allocation5], %s16
      %s18 = sshll.u32 [#allocation4], 4
      %s19 = int_to_ptr.vmem [resolvable:$true] %s18
      %24 = dma.hbm_to_vmem [thread:$0]  %s0, 256, %s19, [#allocation5], 32, 32, 2
    $region5: #{tpu_custom_call.1} parent=1 // pred_fallthru
      _
    // Predicated region
    $region6: #{tpu_custom_call.1} parent=1 // pred_check
      _
    $region7: #{tpu_custom_call.1} parent=1 // pred_check_branch
      %26 = sbr.rel (0) target = $region9
    $region8: #{tpu_custom_call.1} parent=1 // pred_region
      _
    $region9: #{tpu_custom_call.1} parent=1 // pred_fallthru
      _
    // Predicated region
    $region10: #{tpu_custom_call.1} parent=1 // pred_check
      _
    $region11: #{tpu_custom_call.1} parent=1 // pred_check_branch
      %28 = sbr.rel (0) target = $region13
    $region12: #{tpu_custom_call.1} parent=1 // pred_region
      %s30 = ssub.s32 512, 512
      %31 = vsyncadd [#allocation7], %s30
      %s32 = sshll.u32 [#allocation6], 4
      %s33 = int_to_ptr.vmem [resolvable:$true] %s32
      %38 = dma.hbm_to_vmem [thread:$0]  %s2, 512, %s33, [#allocation7], 128, 128, 8
    $region13: #{tpu_custom_call.1} parent=1 // pred_fallthru
      _
    // Predicated region
    $region14: #{tpu_custom_call.1} parent=1 // pred_check
      _
    $region15: #{tpu_custom_call.1} parent=1 // pred_check_branch
      %40 = sbr.rel (0) target = $region17
    $region16: #{tpu_custom_call.1} parent=1 // pred_region
      _
    $region17: #{tpu_custom_call.1} parent=1 // pred_fallthru
      _
    // Predicated region
    $region18: #{tpu_custom_call.1} parent=1 // pred_check
      _
    $region19: #{tpu_custom_call.1} parent=1 // pred_check_branch
      %42 = sbr.rel (0) target = $region21
    $region20: #{tpu_custom_call.1} parent=1 // pred_region
      _
    $region21: #{tpu_custom_call.1} parent=1 // pred_fallthru
      _
    // Predicated region
    $region22: #{tpu_custom_call.1} parent=1 // pred_check
      _
    $region23: #{tpu_custom_call.1} parent=1 // pred_check_branch
      %44 = sbr.rel (0) target = $region25
    $region24: #{tpu_custom_call.1} parent=1 // pred_region
      _
    $region25: #{tpu_custom_call.1} parent=1 // pred_fallthru
      _
    // Predicated region
    $region26: #{tpu_custom_call.1} parent=1 // pred_check
      _
    $region27: #{tpu_custom_call.1} parent=1 // pred_check_branch
      %46 = sbr.rel (0) target = $region29
    $region28: #{tpu_custom_call.1} parent=1 // pred_region
      %47 = dma.done [#allocation5], 256
    $region29: #{tpu_custom_call.1} parent=1 // pred_fallthru
      _
    // Predicated region
    $region30: #{tpu_custom_call.1} parent=1 // pred_check
      _
    $region31: #{tpu_custom_call.1} parent=1 // pred_check_branch
      %49 = sbr.rel (0) target = $region33
    $region32: #{tpu_custom_call.1} parent=1 // pred_region
      %50 = dma.done [#allocation7], 512
    $region33: #{tpu_custom_call.1} parent=1 // pred_fallthru
      _
    %v51 = vld [vmem:[%s1] sm:$0xff]
    %v52 = vld [vmem:[%s1 + $0x8] sm:$0xff]
    %v53 = vld [vmem:[%s1 + $0x10] sm:$0xff]
    %v54 = vld [vmem:[%s1 + $0x18] sm:$0xff]
    %v55 = vld [vmem:[#allocation6] sm:$0xff]
    %v56 = vld [vmem:[#allocation6 + $0x8] sm:$0xff]
    %v57 = vld [vmem:[#allocation6 + $0x10] sm:$0xff]
    %v58 = vld [vmem:[#allocation6 + $0x18] sm:$0xff]
    %v59 = vld [vmem:[%s4] sm:$0xff]
    %v60 = vld [vmem:[%s4 + $0x8] sm:$0xff]
    %v61 = vld [vmem:[%s4 + $0x10] sm:$0xff]
    %v62 = vld [vmem:[%s4 + $0x18] sm:$0xff]
    %v63 = vld [vmem:[%s3] sm:$0x1]
    %v65 = vlaneseq
    %v66 = vshrl.u32 %v65, 7
    %v67 = vsub.s32 0, %v66
    %v68 = vrot.slane %v63, %v67
    %v70 = vld [vmem:[%s5] sm:$0x1]
    %v72 = vlaneseq
    %v73 = vshrl.u32 %v72, 7
    %v74 = vsub.s32 0, %v73
    %v75 = vrot.slane %v70, %v74
    %v77 = vld [vmem:[#allocation4] sm:$0x3]
    %vm78 = vcmask 261120
    %v80 = vsel %vm78, %v77, 0
    %82 = vmatprep.subr.mxu0 0.0
    %83 = vmatpush1.msra.mxu0 %v51
    %84 = vmatprep.subr.mxu0 0.0
    %85 = vmatpush1.msra.mxu0 %v52
    %86 = vmatprep.subr.mxu0 0.0
    %87 = vmatpush1.msra.mxu0 %v53
    %88 = vmatprep.subr.mxu0 0.0
    %89 = vmatpush1.msra.mxu0 %v54
    %90 = vmatprep.subr.mxu0 0.0
    %91 = vmatpush1.msra.mxu0 0.0
    %92 = vmatprep.subr.mxu0 0.0
    %93 = vmatpush1.msra.mxu0 0.0
    %94 = vmatprep.subr.mxu0 0.0
    %95 = vmatpush1.msra.mxu0 0.0
    %96 = vmatprep.subr.mxu0 0.0
    %97 = vmatpush1.msra.mxu0 0.0
    %98 = vmatprep.subr.mxu0 0.0
    %99 = vmatpush1.msra.mxu0 0.0
    %100 = vmatprep.subr.mxu0 0.0
    %101 = vmatpush1.msra.mxu0 0.0
    %102 = vmatprep.subr.mxu0 0.0
    %103 = vmatpush1.msra.mxu0 0.0
    %104 = vmatprep.subr.mxu0 0.0
    %105 = vmatpush1.msra.mxu0 0.0
    %106 = vmatprep.subr.mxu0 0.0
    %107 = vmatpush1.msra.mxu0 0.0
    %108 = vmatprep.subr.mxu0 0.0
    %109 = vmatpush1.msra.mxu0 0.0
    %110 = vmatprep.subr.mxu0 0.0
    %111 = vmatpush1.msra.mxu0 0.0
    %112 = vmatprep.subr.mxu0 0.0
    %113 = vmatpush1.msra.mxu0 0.0
    %114 = vmatprep.subr.mxu0 0.0
    %115 = vmatpush1.msra.mxu0 0.0
    %116 = vmatprep.subr.mxu0 0.0
    %117 = vmatpush1.msra.mxu0 0.0
    %118 = vmatprep.subr.mxu0 0.0
    %119 = vmatpush1.msra.mxu0 0.0
    %120 = vmatprep.subr.mxu0 0.0
    %121 = vmatpush1.msra.mxu0 0.0
    %122 = vmatprep.subr.mxu0 0.0
    %123 = vmatpush1.msra.mxu0 0.0
    %124 = vmatprep.subr.mxu0 0.0
    %125 = vmatpush1.msra.mxu0 0.0
    %126 = vmatprep.subr.mxu0 0.0
    %127 = vmatpush1.msra.mxu0 0.0
    %128 = vmatprep.subr.mxu0 0.0
    %129 = vmatpush1.msra.mxu0 0.0
    %130 = vmatprep.subr.mxu0 0.0
    %131 = vmatpush1.msra.mxu0 0.0
    %132 = vmatprep.subr.mxu0 0.0
    %133 = vmatpush1.msra.mxu0 0.0
    %134 = vmatprep.subr.mxu0 0.0
    %135 = vmatpush1.msra.mxu0 0.0
    %136 = vmatprep.subr.mxu0 0.0
    %137 = vmatpush1.msra.mxu0 0.0
    %138 = vmatprep.subr.mxu0 0.0
    %139 = vmatpush1.msra.mxu0 0.0
    %140 = vmatprep.subr.mxu0 0.0
    %141 = vmatpush1.msra.mxu0 0.0
    %142 = vmatprep.subr.mxu0 0.0
    %143 = vmatpush1.msra.mxu0 0.0
    %144 = vmatprep.subr.mxu0 0.0
    %145 = vmatpush1.msra.mxu0 0.0
    %146 = vmatprep.mubr.f32.mxu0 0.0
    %147 = vmatmul.mubr.f32.gmra.mrb[0].mxu0 %v80
    %v148 = vpop.f32.mrb[0].mxu0
    %v149 = vadd.f32 %v68, %v148
    %v150 = vpop.f32.mrb[0].mxu0
    %151 = vdwg.mxu0
    %152 = vst [vmem:[#allocation2] sm:$0x3] %v149
    %s153 = scalar_lea.vmem [#allocation4], 2
    %v154 = vld [vmem:[%s153] sm:$0x3]
    %v156 = vsel %vm78, %v154, 0
    %158 = vmatprep.subr.mxu0 0.0
    %159 = vmatpush1.msra.mxu0 %v51
    %160 = vmatprep.subr.mxu0 0.0
    %161 = vmatpush1.msra.mxu0 %v52
    %162 = vmatprep.subr.mxu0 0.0
    %163 = vmatpush1.msra.mxu0 %v53
    %164 = vmatprep.subr.mxu0 0.0
    %165 = vmatpush1.msra.mxu0 %v54
    %166 = vmatprep.subr.mxu0 0.0
    %167 = vmatpush1.msra.mxu0 0.0
    %168 = vmatprep.subr.mxu0 0.0
    %169 = vmatpush1.msra.mxu0 0.0
    %170 = vmatprep.subr.mxu0 0.0
    %171 = vmatpush1.msra.mxu0 0.0
    %172 = vmatprep.subr.mxu0 0.0
    %173 = vmatpush1.msra.mxu0 0.0
    %174 = vmatprep.subr.mxu0 0.0
    %175 = vmatpush1.msra.mxu0 0.0
    %176 = vmatprep.subr.mxu0 0.0
    %177 = vmatpush1.msra.mxu0 0.0
    %178 = vmatprep.subr.mxu0 0.0
    %179 = vmatpush1.msra.mxu0 0.0
    %180 = vmatprep.subr.mxu0 0.0
    %181 = vmatpush1.msra.mxu0 0.0
    %182 = vmatprep.subr.mxu0 0.0
    %183 = vmatpush1.msra.mxu0 0.0
    %184 = vmatprep.subr.mxu0 0.0
    %185 = vmatpush1.msra.mxu0 0.0
    %186 = vmatprep.subr.mxu0 0.0
    %187 = vmatpush1.msra.mxu0 0.0
    %188 = vmatprep.subr.mxu0 0.0
    %189 = vmatpush1.msra.mxu0 0.0
    %190 = vmatprep.subr.mxu0 0.0
    %191 = vmatpush1.msra.mxu0 0.0
    %192 = vmatprep.subr.mxu0 0.0
    %193 = vmatpush1.msra.mxu0 0.0
    %194 = vmatprep.subr.mxu0 0.0
    %195 = vmatpush1.msra.mxu0 0.0
    %196 = vmatprep.subr.mxu0 0.0
    %197 = vmatpush1.msra.mxu0 0.0
    %198 = vmatprep.subr.mxu0 0.0
    %199 = vmatpush1.msra.mxu0 0.0
    %200 = vmatprep.subr.mxu0 0.0
    %201 = vmatpush1.msra.mxu0 0.0
    %202 = vmatprep.subr.mxu0 0.0
    %203 = vmatpush1.msra.mxu0 0.0
    %204 = vmatprep.subr.mxu0 0.0
    %205 = vmatpush1.msra.mxu0 0.0
    %206 = vmatprep.subr.mxu0 0.0
    %207 = vmatpush1.msra.mxu0 0.0
    %208 = vmatprep.subr.mxu0 0.0
    %209 = vmatpush1.msra.mxu0 0.0
    %210 = vmatprep.subr.mxu0 0.0
    %211 = vmatpush1.msra.mxu0 0.0
    %212 = vmatprep.subr.mxu0 0.0
    %213 = vmatpush1.msra.mxu0 0.0
    %214 = vmatprep.subr.mxu0 0.0
    %215 = vmatpush1.msra.mxu0 0.0
    %216 = vmatprep.subr.mxu0 0.0
    %217 = vmatpush1.msra.mxu0 0.0
    %218 = vmatprep.subr.mxu0 0.0
    %219 = vmatpush1.msra.mxu0 0.0
    %220 = vmatprep.subr.mxu0 0.0
    %221 = vmatpush1.msra.mxu0 0.0
    %222 = vmatprep.mubr.f32.mxu0 0.0
    %223 = vmatmul.mubr.f32.gmra.mrb[0].mxu0 %v156
    %v224 = vpop.f32.mrb[0].mxu0
    %v225 = vadd.f32 %v68, %v224
    %v226 = vpop.f32.mrb[0].mxu0
    %227 = vdwg.mxu0
    %s228 = scalar_lea.vmem [#allocation2], 2
    %229 = vst [vmem:[%s228] sm:$0x3] %v225
    %s230 = scalar_lea.vmem [#allocation4], 4
    %v231 = vld [vmem:[%s230] sm:$0x3]
    %v233 = vsel %vm78, %v231, 0
    %235 = vmatprep.subr.mxu0 0.0
    %236 = vmatpush1.msra.mxu0 %v51
    %237 = vmatprep.subr.mxu0 0.0
    %238 = vmatpush1.msra.mxu0 %v52
    %239 = vmatprep.subr.mxu0 0.0
    %240 = vmatpush1.msra.mxu0 %v53
    %241 = vmatprep.subr.mxu0 0.0
    %242 = vmatpush1.msra.mxu0 %v54
    %243 = vmatprep.subr.mxu0 0.0
    %244 = vmatpush1.msra.mxu0 0.0
    %245 = vmatprep.subr.mxu0 0.0
    %246 = vmatpush1.msra.mxu0 0.0
    %247 = vmatprep.subr.mxu0 0.0
    %248 = vmatpush1.msra.mxu0 0.0
    %249 = vmatprep.subr.mxu0 0.0
    %250 = vmatpush1.msra.mxu0 0.0
    %251 = vmatprep.subr.mxu0 0.0
    %252 = vmatpush1.msra.mxu0 0.0
    %253 = vmatprep.subr.mxu0 0.0
    %254 = vmatpush1.msra.mxu0 0.0
    %255 = vmatprep.subr.mxu0 0.0
    %256 = vmatpush1.msra.mxu0 0.0
    %257 = vmatprep.subr.mxu0 0.0
    %258 = vmatpush1.msra.mxu0 0.0
    %259 = vmatprep.subr.mxu0 0.0
    %260 = vmatpush1.msra.mxu0 0.0
    %261 = vmatprep.subr.mxu0 0.0
    %262 = vmatpush1.msra.mxu0 0.0
    %263 = vmatprep.subr.mxu0 0.0
    %264 = vmatpush1.msra.mxu0 0.0
    %265 = vmatprep.subr.mxu0 0.0
    %266 = vmatpush1.msra.mxu0 0.0
    %267 = vmatprep.subr.mxu0 0.0
    %268 = vmatpush1.msra.mxu0 0.0
    %269 = vmatprep.subr.mxu0 0.0
    %270 = vmatpush1.msra.mxu0 0.0
    %271 = vmatprep.subr.mxu0 0.0
    %272 = vmatpush1.msra.mxu0 0.0
    %273 = vmatprep.subr.mxu0 0.0
    %274 = vmatpush1.msra.mxu0 0.0
    %275 = vmatprep.subr.mxu0 0.0
    %276 = vmatpush1.msra.mxu0 0.0
    %277 = vmatprep.subr.mxu0 0.0
    %278 = vmatpush1.msra.mxu0 0.0
    %279 = vmatprep.subr.mxu0 0.0
    %280 = vmatpush1.msra.mxu0 0.0
    %281 = vmatprep.subr.mxu0 0.0
    %282 = vmatpush1.msra.mxu0 0.0
    %283 = vmatprep.subr.mxu0 0.0
    %284 = vmatpush1.msra.mxu0 0.0
    %285 = vmatprep.subr.mxu0 0.0
    %286 = vmatpush1.msra.mxu0 0.0
    %287 = vmatprep.subr.mxu0 0.0
    %288 = vmatpush1.msra.mxu0 0.0
    %289 = vmatprep.subr.mxu0 0.0
    %290 = vmatpush1.msra.mxu0 0.0
    %291 = vmatprep.subr.mxu0 0.0
    %292 = vmatpush1.msra.mxu0 0.0
    %293 = vmatprep.subr.mxu0 0.0
    %294 = vmatpush1.msra.mxu0 0.0
    %295 = vmatprep.subr.mxu0 0.0
    %296 = vmatpush1.msra.mxu0 0.0
    %297 = vmatprep.subr.mxu0 0.0
    %298 = vmatpush1.msra.mxu0 0.0
    %299 = vmatprep.mubr.f32.mxu0 0.0
    %300 = vmatmul.mubr.f32.gmra.mrb[0].mxu0 %v233
    %v301 = vpop.f32.mrb[0].mxu0
    %v302 = vadd.f32 %v68, %v301
    %v303 = vpop.f32.mrb[0].mxu0
    %304 = vdwg.mxu0
    %s305 = scalar_lea.vmem [#allocation2], 4
    %306 = vst [vmem:[%s305] sm:$0x3] %v302
    %s307 = scalar_lea.vmem [#allocation4], 6
    %v308 = vld [vmem:[%s307] sm:$0x3]
    %v310 = vsel %vm78, %v308, 0
    %312 = vmatprep.subr.mxu0 0.0
    %313 = vmatpush1.msra.mxu0 %v51
    %314 = vmatprep.subr.mxu0 0.0
    %315 = vmatpush1.msra.mxu0 %v52
    %316 = vmatprep.subr.mxu0 0.0
    %317 = vmatpush1.msra.mxu0 %v53
    %318 = vmatprep.subr.mxu0 0.0
    %319 = vmatpush1.msra.mxu0 %v54
    %320 = vmatprep.subr.mxu0 0.0
    %321 = vmatpush1.msra.mxu0 0.0
    %322 = vmatprep.subr.mxu0 0.0
    %323 = vmatpush1.msra.mxu0 0.0
    %324 = vmatprep.subr.mxu0 0.0
    %325 = vmatpush1.msra.mxu0 0.0
    %326 = vmatprep.subr.mxu0 0.0
    %327 = vmatpush1.msra.mxu0 0.0
    %328 = vmatprep.subr.mxu0 0.0
    %329 = vmatpush1.msra.mxu0 0.0
    %330 = vmatprep.subr.mxu0 0.0
    %331 = vmatpush1.msra.mxu0 0.0
    %332 = vmatprep.subr.mxu0 0.0
    %333 = vmatpush1.msra.mxu0 0.0
    %334 = vmatprep.subr.mxu0 0.0
    %335 = vmatpush1.msra.mxu0 0.0
    %336 = vmatprep.subr.mxu0 0.0
    %337 = vmatpush1.msra.mxu0 0.0
    %338 = vmatprep.subr.mxu0 0.0
    %339 = vmatpush1.msra.mxu0 0.0
    %340 = vmatprep.subr.mxu0 0.0
    %341 = vmatpush1.msra.mxu0 0.0
    %342 = vmatprep.subr.mxu0 0.0
    %343 = vmatpush1.msra.mxu0 0.0
    %344 = vmatprep.subr.mxu0 0.0
    %345 = vmatpush1.msra.mxu0 0.0
    %346 = vmatprep.subr.mxu0 0.0
    %347 = vmatpush1.msra.mxu0 0.0
    %348 = vmatprep.subr.mxu0 0.0
    %349 = vmatpush1.msra.mxu0 0.0
    %350 = vmatprep.subr.mxu0 0.0
    %351 = vmatpush1.msra.mxu0 0.0
    %352 = vmatprep.subr.mxu0 0.0
    %353 = vmatpush1.msra.mxu0 0.0
    %354 = vmatprep.subr.mxu0 0.0
    %355 = vmatpush1.msra.mxu0 0.0
    %356 = vmatprep.subr.mxu0 0.0
    %357 = vmatpush1.msra.mxu0 0.0
    %358 = vmatprep.subr.mxu0 0.0
    %359 = vmatpush1.msra.mxu0 0.0
    %360 = vmatprep.subr.mxu0 0.0
    %361 = vmatpush1.msra.mxu0 0.0
    %362 = vmatprep.subr.mxu0 0.0
    %363 = vmatpush1.msra.mxu0 0.0
    %364 = vmatprep.subr.mxu0 0.0
    %365 = vmatpush1.msra.mxu0 0.0
    %366 = vmatprep.subr.mxu0 0.0
    %367 = vmatpush1.msra.mxu0 0.0
    %368 = vmatprep.subr.mxu0 0.0
    %369 = vmatpush1.msra.mxu0 0.0
    %370 = vmatprep.subr.mxu0 0.0
    %371 = vmatpush1.msra.mxu0 0.0
    %372 = vmatprep.subr.mxu0 0.0
    %373 = vmatpush1.msra.mxu0 0.0
    %374 = vmatprep.subr.mxu0 0.0
    %375 = vmatpush1.msra.mxu0 0.0
    %376 = vmatprep.mubr.f32.mxu0 0.0
    %377 = vmatmul.mubr.f32.gmra.mrb[0].mxu0 %v310
    %v378 = vpop.f32.mrb[0].mxu0
    %v379 = vadd.f32 %v68, %v378
    %v380 = vpop.f32.mrb[0].mxu0
    %381 = vdwg.mxu0
    %s382 = scalar_lea.vmem [#allocation2], 6
    %383 = vst [vmem:[%s382] sm:$0x3] %v379
    %s384 = scalar_lea.vmem [#allocation4], 8
    %v385 = vld [vmem:[%s384] sm:$0x3]
    %v387 = vsel %vm78, %v385, 0
    %389 = vmatprep.subr.mxu0 0.0
    %390 = vmatpush1.msra.mxu0 %v51
    %391 = vmatprep.subr.mxu0 0.0
    %392 = vmatpush1.msra.mxu0 %v52
    %393 = vmatprep.subr.mxu0 0.0
    %394 = vmatpush1.msra.mxu0 %v53
    %395 = vmatprep.subr.mxu0 0.0
    %396 = vmatpush1.msra.mxu0 %v54
    %397 = vmatprep.subr.mxu0 0.0
    %398 = vmatpush1.msra.mxu0 0.0
    %399 = vmatprep.subr.mxu0 0.0
    %400 = vmatpush1.msra.mxu0 0.0
    %401 = vmatprep.subr.mxu0 0.0
    %402 = vmatpush1.msra.mxu0 0.0
    %403 = vmatprep.subr.mxu0 0.0
    %404 = vmatpush1.msra.mxu0 0.0
    %405 = vmatprep.subr.mxu0 0.0
    %406 = vmatpush1.msra.mxu0 0.0
    %407 = vmatprep.subr.mxu0 0.0
    %408 = vmatpush1.msra.mxu0 0.0
    %409 = vmatprep.subr.mxu0 0.0
    %410 = vmatpush1.msra.mxu0 0.0
    %411 = vmatprep.subr.mxu0 0.0
    %412 = vmatpush1.msra.mxu0 0.0
    %413 = vmatprep.subr.mxu0 0.0
    %414 = vmatpush1.msra.mxu0 0.0
    %415 = vmatprep.subr.mxu0 0.0
    %416 = vmatpush1.msra.mxu0 0.0
    %417 = vmatprep.subr.mxu0 0.0
    %418 = vmatpush1.msra.mxu0 0.0
    %419 = vmatprep.subr.mxu0 0.0
    %420 = vmatpush1.msra.mxu0 0.0
    %421 = vmatprep.subr.mxu0 0.0
    %422 = vmatpush1.msra.mxu0 0.0
    %423 = vmatprep.subr.mxu0 0.0
    %424 = vmatpush1.msra.mxu0 0.0
    %425 = vmatprep.subr.mxu0 0.0
    %426 = vmatpush1.msra.mxu0 0.0
    %427 = vmatprep.subr.mxu0 0.0
    %428 = vmatpush1.msra.mxu0 0.0
    %429 = vmatprep.subr.mxu0 0.0
    %430 = vmatpush1.msra.mxu0 0.0
    %431 = vmatprep.subr.mxu0 0.0
    %432 = vmatpush1.msra.mxu0 0.0
    %433 = vmatprep.subr.mxu0 0.0
    %434 = vmatpush1.msra.mxu0 0.0
    %435 = vmatprep.subr.mxu0 0.0
    %436 = vmatpush1.msra.mxu0 0.0
    %437 = vmatprep.subr.mxu0 0.0
    %438 = vmatpush1.msra.mxu0 0.0
    %439 = vmatprep.subr.mxu0 0.0
    %440 = vmatpush1.msra.mxu0 0.0
    %441 = vmatprep.subr.mxu0 0.0
    %442 = vmatpush1.msra.mxu0 0.0
    %443 = vmatprep.subr.mxu0 0.0
    %444 = vmatpush1.msra.mxu0 0.0
    %445 = vmatprep.subr.mxu0 0.0
    %446 = vmatpush1.msra.mxu0 0.0
    %447 = vmatprep.subr.mxu0 0.0
    %448 = vmatpush1.msra.mxu0 0.0
    %449 = vmatprep.subr.mxu0 0.0
    %450 = vmatpush1.msra.mxu0 0.0
    %451 = vmatprep.subr.mxu0 0.0
    %452 = vmatpush1.msra.mxu0 0.0
    %453 = vmatprep.mubr.f32.mxu0 0.0
    %454 = vmatmul.mubr.f32.gmra.mrb[0].mxu0 %v387
    %v455 = vpop.f32.mrb[0].mxu0
    %v456 = vadd.f32 %v68, %v455
    %v457 = vpop.f32.mrb[0].mxu0
    %458 = vdwg.mxu0
    %s459 = scalar_lea.vmem [#allocation2], 8
    %460 = vst [vmem:[%s459] sm:$0x3] %v456
    %s461 = scalar_lea.vmem [#allocation4], 10
    %v462 = vld [vmem:[%s461] sm:$0x3]
    %v464 = vsel %vm78, %v462, 0
    %466 = vmatprep.subr.mxu0 0.0
    %467 = vmatpush1.msra.mxu0 %v51
    %468 = vmatprep.subr.mxu0 0.0
    %469 = vmatpush1.msra.mxu0 %v52
    %470 = vmatprep.subr.mxu0 0.0
    %471 = vmatpush1.msra.mxu0 %v53
    %472 = vmatprep.subr.mxu0 0.0
    %473 = vmatpush1.msra.mxu0 %v54
    %474 = vmatprep.subr.mxu0 0.0
    %475 = vmatpush1.msra.mxu0 0.0
    %476 = vmatprep.subr.mxu0 0.0
    %477 = vmatpush1.msra.mxu0 0.0
    %478 = vmatprep.subr.mxu0 0.0
    %479 = vmatpush1.msra.mxu0 0.0
    %480 = vmatprep.subr.mxu0 0.0
    %481 = vmatpush1.msra.mxu0 0.0
    %482 = vmatprep.subr.mxu0 0.0
    %483 = vmatpush1.msra.mxu0 0.0
    %484 = vmatprep.subr.mxu0 0.0
    %485 = vmatpush1.msra.mxu0 0.0
    %486 = vmatprep.subr.mxu0 0.0
    %487 = vmatpush1.msra.mxu0 0.0
    %488 = vmatprep.subr.mxu0 0.0
    %489 = vmatpush1.msra.mxu0 0.0
    %490 = vmatprep.subr.mxu0 0.0
    %491 = vmatpush1.msra.mxu0 0.0
    %492 = vmatprep.subr.mxu0 0.0
    %493 = vmatpush1.msra.mxu0 0.0
    %494 = vmatprep.subr.mxu0 0.0
    %495 = vmatpush1.msra.mxu0 0.0
    %496 = vmatprep.subr.mxu0 0.0
    %497 = vmatpush1.msra.mxu0 0.0
    %498 = vmatprep.subr.mxu0 0.0
    %499 = vmatpush1.msra.mxu0 0.0
    %500 = vmatprep.subr.mxu0 0.0
    %501 = vmatpush1.msra.mxu0 0.0
    %502 = vmatprep.subr.mxu0 0.0
    %503 = vmatpush1.msra.mxu0 0.0
    %504 = vmatprep.subr.mxu0 0.0
    %505 = vmatpush1.msra.mxu0 0.0
    %506 = vmatprep.subr.mxu0 0.0
    %507 = vmatpush1.msra.mxu0 0.0
    %508 = vmatprep.subr.mxu0 0.0
    %509 = vmatpush1.msra.mxu0 0.0
    %510 = vmatprep.subr.mxu0 0.0
    %511 = vmatpush1.msra.mxu0 0.0
    %512 = vmatprep.subr.mxu0 0.0
    %513 = vmatpush1.msra.mxu0 0.0
    %514 = vmatprep.subr.mxu0 0.0
    %515 = vmatpush1.msra.mxu0 0.0
    %516 = vmatprep.subr.mxu0 0.0
    %517 = vmatpush1.msra.mxu0 0.0
    %518 = vmatprep.subr.mxu0 0.0
    %519 = vmatpush1.msra.mxu0 0.0
    %520 = vmatprep.subr.mxu0 0.0
    %521 = vmatpush1.msra.mxu0 0.0
    %522 = vmatprep.subr.mxu0 0.0
    %523 = vmatpush1.msra.mxu0 0.0
    %524 = vmatprep.subr.mxu0 0.0
    %525 = vmatpush1.msra.mxu0 0.0
    %526 = vmatprep.subr.mxu0 0.0
    %527 = vmatpush1.msra.mxu0 0.0
    %528 = vmatprep.subr.mxu0 0.0
    %529 = vmatpush1.msra.mxu0 0.0
    %530 = vmatprep.mubr.f32.mxu0 0.0
    %531 = vmatmul.mubr.f32.gmra.mrb[0].mxu0 %v464
    %v532 = vpop.f32.mrb[0].mxu0
    %v533 = vadd.f32 %v68, %v532
    %v534 = vpop.f32.mrb[0].mxu0
    %535 = vdwg.mxu0
    %s536 = scalar_lea.vmem [#allocation2], 10
    %537 = vst [vmem:[%s536] sm:$0x3] %v533
    %s538 = scalar_lea.vmem [#allocation4], 12
    %v539 = vld [vmem:[%s538] sm:$0x3]
    %v541 = vsel %vm78, %v539, 0
    %543 = vmatprep.subr.mxu0 0.0
    %544 = vmatpush1.msra.mxu0 %v51
    %545 = vmatprep.subr.mxu0 0.0
    %546 = vmatpush1.msra.mxu0 %v52
    %547 = vmatprep.subr.mxu0 0.0
    %548 = vmatpush1.msra.mxu0 %v53
    %549 = vmatprep.subr.mxu0 0.0
    %550 = vmatpush1.msra.mxu0 %v54
    %551 = vmatprep.subr.mxu0 0.0
    %552 = vmatpush1.msra.mxu0 0.0
    %553 = vmatprep.subr.mxu0 0.0
    %554 = vmatpush1.msra.mxu0 0.0
    %555 = vmatprep.subr.mxu0 0.0
    %556 = vmatpush1.msra.mxu0 0.0
    %557 = vmatprep.subr.mxu0 0.0
    %558 = vmatpush1.msra.mxu0 0.0
    %559 = vmatprep.subr.mxu0 0.0
    %560 = vmatpush1.msra.mxu0 0.0
    %561 = vmatprep.subr.mxu0 0.0
    %562 = vmatpush1.msra.mxu0 0.0
    %563 = vmatprep.subr.mxu0 0.0
    %564 = vmatpush1.msra.mxu0 0.0
    %565 = vmatprep.subr.mxu0 0.0
    %566 = vmatpush1.msra.mxu0 0.0
    %567 = vmatprep.subr.mxu0 0.0
    %568 = vmatpush1.msra.mxu0 0.0
    %569 = vmatprep.subr.mxu0 0.0
    %570 = vmatpush1.msra.mxu0 0.0
    %571 = vmatprep.subr.mxu0 0.0
    %572 = vmatpush1.msra.mxu0 0.0
    %573 = vmatprep.subr.mxu0 0.0
    %574 = vmatpush1.msra.mxu0 0.0
    %575 = vmatprep.subr.mxu0 0.0
    %576 = vmatpush1.msra.mxu0 0.0
    %577 = vmatprep.subr.mxu0 0.0
    %578 = vmatpush1.msra.mxu0 0.0
    %579 = vmatprep.subr.mxu0 0.0
    %580 = vmatpush1.msra.mxu0 0.0
    %581 = vmatprep.subr.mxu0 0.0
    %582 = vmatpush1.msra.mxu0 0.0
    %583 = vmatprep.subr.mxu0 0.0
    %584 = vmatpush1.msra.mxu0 0.0
    %585 = vmatprep.subr.mxu0 0.0
    %586 = vmatpush1.msra.mxu0 0.0
    %587 = vmatprep.subr.mxu0 0.0
    %588 = vmatpush1.msra.mxu0 0.0
    %589 = vmatprep.subr.mxu0 0.0
    %590 = vmatpush1.msra.mxu0 0.0
    %591 = vmatprep.subr.mxu0 0.0
    %592 = vmatpush1.msra.mxu0 0.0
    %593 = vmatprep.subr.mxu0 0.0
    %594 = vmatpush1.msra.mxu0 0.0
    %595 = vmatprep.subr.mxu0 0.0
    %596 = vmatpush1.msra.mxu0 0.0
    %597 = vmatprep.subr.mxu0 0.0
    %598 = vmatpush1.msra.mxu0 0.0
    %599 = vmatprep.subr.mxu0 0.0
    %600 = vmatpush1.msra.mxu0 0.0
    %601 = vmatprep.subr.mxu0 0.0
    %602 = vmatpush1.msra.mxu0 0.0
    %603 = vmatprep.subr.mxu0 0.0
    %604 = vmatpush1.msra.mxu0 0.0
    %605 = vmatprep.subr.mxu0 0.0
    %606 = vmatpush1.msra.mxu0 0.0
    %607 = vmatprep.mubr.f32.mxu0 0.0
    %608 = vmatmul.mubr.f32.gmra.mrb[0].mxu0 %v541
    %v609 = vpop.f32.mrb[0].mxu0
    %v610 = vadd.f32 %v68, %v609
    %v611 = vpop.f32.mrb[0].mxu0
    %612 = vdwg.mxu0
    %s613 = scalar_lea.vmem [#allocation2], 12
    %614 = vst [vmem:[%s613] sm:$0x3] %v610
    %s615 = scalar_lea.vmem [#allocation4], 14
    %v616 = vld [vmem:[%s615] sm:$0x3]
    %v618 = vsel %vm78, %v616, 0
    %620 = vmatprep.subr.mxu0 0.0
    %621 = vmatpush1.msra.mxu0 %v51
    %622 = vmatprep.subr.mxu0 0.0
    %623 = vmatpush1.msra.mxu0 %v52
    %624 = vmatprep.subr.mxu0 0.0
    %625 = vmatpush1.msra.mxu0 %v53
    %626 = vmatprep.subr.mxu0 0.0
    %627 = vmatpush1.msra.mxu0 %v54
    %628 = vmatprep.subr.mxu0 0.0
    %629 = vmatpush1.msra.mxu0 0.0
    %630 = vmatprep.subr.mxu0 0.0
    %631 = vmatpush1.msra.mxu0 0.0
    %632 = vmatprep.subr.mxu0 0.0
    %633 = vmatpush1.msra.mxu0 0.0
    %634 = vmatprep.subr.mxu0 0.0
    %635 = vmatpush1.msra.mxu0 0.0
    %636 = vmatprep.subr.mxu0 0.0
    %637 = vmatpush1.msra.mxu0 0.0
    %638 = vmatprep.subr.mxu0 0.0
    %639 = vmatpush1.msra.mxu0 0.0
    %640 = vmatprep.subr.mxu0 0.0
    %641 = vmatpush1.msra.mxu0 0.0
    %642 = vmatprep.subr.mxu0 0.0
    %643 = vmatpush1.msra.mxu0 0.0
    %644 = vmatprep.subr.mxu0 0.0
    %645 = vmatpush1.msra.mxu0 0.0
    %646 = vmatprep.subr.mxu0 0.0
    %647 = vmatpush1.msra.mxu0 0.0
    %648 = vmatprep.subr.mxu0 0.0
    %649 = vmatpush1.msra.mxu0 0.0
    %650 = vmatprep.subr.mxu0 0.0
    %651 = vmatpush1.msra.mxu0 0.0
    %652 = vmatprep.subr.mxu0 0.0
    %653 = vmatpush1.msra.mxu0 0.0
    %654 = vmatprep.subr.mxu0 0.0
    %655 = vmatpush1.msra.mxu0 0.0
    %656 = vmatprep.subr.mxu0 0.0
    %657 = vmatpush1.msra.mxu0 0.0
    %658 = vmatprep.subr.mxu0 0.0
    %659 = vmatpush1.msra.mxu0 0.0
    %660 = vmatprep.subr.mxu0 0.0
    %661 = vmatpush1.msra.mxu0 0.0
    %662 = vmatprep.subr.mxu0 0.0
    %663 = vmatpush1.msra.mxu0 0.0
    %664 = vmatprep.subr.mxu0 0.0
    %665 = vmatpush1.msra.mxu0 0.0
    %666 = vmatprep.subr.mxu0 0.0
    %667 = vmatpush1.msra.mxu0 0.0
    %668 = vmatprep.subr.mxu0 0.0
    %669 = vmatpush1.msra.mxu0 0.0
    %670 = vmatprep.subr.mxu0 0.0
    %671 = vmatpush1.msra.mxu0 0.0
    %672 = vmatprep.subr.mxu0 0.0
    %673 = vmatpush1.msra.mxu0 0.0
    %674 = vmatprep.subr.mxu0 0.0
    %675 = vmatpush1.msra.mxu0 0.0
    %676 = vmatprep.subr.mxu0 0.0
    %677 = vmatpush1.msra.mxu0 0.0
    %678 = vmatprep.subr.mxu0 0.0
    %679 = vmatpush1.msra.mxu0 0.0
    %680 = vmatprep.subr.mxu0 0.0
    %681 = vmatpush1.msra.mxu0 0.0
    %682 = vmatprep.subr.mxu0 0.0
    %683 = vmatpush1.msra.mxu0 0.0
    %684 = vmatprep.mubr.f32.mxu0 0.0
    %685 = vmatmul.mubr.f32.gmra.mrb[0].mxu0 %v618
    %v686 = vpop.f32.mrb[0].mxu0
    %v687 = vadd.f32 %v68, %v686
    %v688 = vpop.f32.mrb[0].mxu0
    %689 = vdwg.mxu0
    %s690 = scalar_lea.vmem [#allocation2], 14
    %691 = vst [vmem:[%s690] sm:$0x3] %v687
    %v692 = vld [vmem:[#allocation2] sm:$0x3]
    %v694 = vsel %vm78, 0.0, 0
    %696 = vmatprep.subr.mxu0 0.0
    %697 = vmatpush1.msra.mxu0 %v55
    %698 = vmatprep.subr.mxu0 0.0
    %699 = vmatpush1.msra.mxu0 %v56
    %700 = vmatprep.subr.mxu0 0.0
    %701 = vmatpush1.msra.mxu0 %v57
    %702 = vmatprep.subr.mxu0 0.0
    %703 = vmatpush1.msra.mxu0 %v58
    %704 = vmatprep.subr.mxu0 0.0
    %705 = vmatpush1.msra.mxu0 0.0
    %706 = vmatprep.subr.mxu0 0.0
    %707 = vmatpush1.msra.mxu0 0.0
    %708 = vmatprep.subr.mxu0 0.0
    %709 = vmatpush1.msra.mxu0 0.0
    %710 = vmatprep.subr.mxu0 0.0
    %711 = vmatpush1.msra.mxu0 0.0
    %712 = vmatprep.subr.mxu0 0.0
    %713 = vmatpush1.msra.mxu0 0.0
    %714 = vmatprep.subr.mxu0 0.0
    %715 = vmatpush1.msra.mxu0 0.0
    %716 = vmatprep.subr.mxu0 0.0
    %717 = vmatpush1.msra.mxu0 0.0
    %718 = vmatprep.subr.mxu0 0.0
    %719 = vmatpush1.msra.mxu0 0.0
    %720 = vmatprep.subr.mxu0 0.0
    %721 = vmatpush1.msra.mxu0 0.0
    %722 = vmatprep.subr.mxu0 0.0
    %723 = vmatpush1.msra.mxu0 0.0
    %724 = vmatprep.subr.mxu0 0.0
    %725 = vmatpush1.msra.mxu0 0.0
    %726 = vmatprep.subr.mxu0 0.0
    %727 = vmatpush1.msra.mxu0 0.0
    %728 = vmatprep.subr.mxu0 0.0
    %729 = vmatpush1.msra.mxu0 0.0
    %730 = vmatprep.subr.mxu0 0.0
    %731 = vmatpush1.msra.mxu0 0.0
    %732 = vmatprep.subr.mxu0 0.0
    %733 = vmatpush1.msra.mxu0 0.0
    %734 = vmatprep.subr.mxu0 0.0
    %735 = vmatpush1.msra.mxu0 0.0
    %736 = vmatprep.subr.mxu0 0.0
    %737 = vmatpush1.msra.mxu0 0.0
    %738 = vmatprep.subr.mxu0 0.0
    %739 = vmatpush1.msra.mxu0 0.0
    %740 = vmatprep.subr.mxu0 0.0
    %741 = vmatpush1.msra.mxu0 0.0
    %742 = vmatprep.subr.mxu0 0.0
    %743 = vmatpush1.msra.mxu0 0.0
    %744 = vmatprep.subr.mxu0 0.0
    %745 = vmatpush1.msra.mxu0 0.0
    %746 = vmatprep.subr.mxu0 0.0
    %747 = vmatpush1.msra.mxu0 0.0
    %748 = vmatprep.subr.mxu0 0.0
    %749 = vmatpush1.msra.mxu0 0.0
    %750 = vmatprep.subr.mxu0 0.0
    %751 = vmatpush1.msra.mxu0 0.0
    %752 = vmatprep.subr.mxu0 0.0
    %753 = vmatpush1.msra.mxu0 0.0
    %754 = vmatprep.subr.mxu0 0.0
    %755 = vmatpush1.msra.mxu0 0.0
    %756 = vmatprep.subr.mxu0 0.0
    %757 = vmatpush1.msra.mxu0 0.0
    %758 = vmatprep.subr.mxu0 0.0
    %759 = vmatpush1.msra.mxu0 0.0
    %760 = vmatprep.mubr.f32.mxu0 0.0
    %761 = vmatmul.mubr.f32.gmra.mrb[0].mxu0 %v694
    %v762 = vpop.f32.mrb[0].mxu0
    %v763 = vadd.f32 0.0, %v762
    %v764 = vpop.f32.mrb[0].mxu0
    %765 = vdwg.mxu0
    %v766 = vadd.f32 %v692, %v763
    %v767 = vxor.u32 %v766, 2147483648
    %v768 = vmul.f32 %v767, 1.442695
    %v769 = vpow.pop %v768
    %v770 = vadd.f32 %v769, 1.0
    %v771 = vrcp.pop %v770
    %v772 = vmul.f32 1.0, %v771
    %v773 = vtanh.pop %v766
    %v774 = vmul.f32 %v772, 0.0
    %776 = vrot.lane.b32.xlu0 %v773, 32
    %v777 = vpop.permute.xlu0 %776
    %v779 = vmul.f32 %v772, %v777
    %781 = vrot.lane.b32.xlu0 %v779, 32
    %v782 = vpop.permute.xlu0 %781
    %v784 = vadd.f32 %v774, %v782
    %v785 = vtanh.pop %v784
    %787 = vrot.lane.b32.xlu0 %v785, 32
    %v788 = vpop.permute.xlu0 %787
    %v790 = vmul.f32 %v772, %v788
    %792 = vrot.lane.b32.xlu0 %v790, 64
    %v793 = vpop.permute.xlu0 %792
    %vm795 = vcmask 254976
    %796 = vst.msk [vmem:[#allocation3] sm:$0x3] %vm795, %v793
    %v797 = vld [vmem:[%s228] sm:$0x3]
    %v798 = vsel %vm78, %v793, 0
    %800 = vmatprep.subr.mxu0 0.0
    %801 = vmatpush1.msra.mxu0 %v55
    %802 = vmatprep.subr.mxu0 0.0
    %803 = vmatpush1.msra.mxu0 %v56
    %804 = vmatprep.subr.mxu0 0.0
    %805 = vmatpush1.msra.mxu0 %v57
    %806 = vmatprep.subr.mxu0 0.0
    %807 = vmatpush1.msra.mxu0 %v58
    %808 = vmatprep.subr.mxu0 0.0
    %809 = vmatpush1.msra.mxu0 0.0
    %810 = vmatprep.subr.mxu0 0.0
    %811 = vmatpush1.msra.mxu0 0.0
    %812 = vmatprep.subr.mxu0 0.0
    %813 = vmatpush1.msra.mxu0 0.0
    %814 = vmatprep.subr.mxu0 0.0
    %815 = vmatpush1.msra.mxu0 0.0
    %816 = vmatprep.subr.mxu0 0.0
    %817 = vmatpush1.msra.mxu0 0.0
    %818 = vmatprep.subr.mxu0 0.0
    %819 = vmatpush1.msra.mxu0 0.0
    %820 = vmatprep.subr.mxu0 0.0
    %821 = vmatpush1.msra.mxu0 0.0
    %822 = vmatprep.subr.mxu0 0.0
    %823 = vmatpush1.msra.mxu0 0.0
    %824 = vmatprep.subr.mxu0 0.0
    %825 = vmatpush1.msra.mxu0 0.0
    %826 = vmatprep.subr.mxu0 0.0
    %827 = vmatpush1.msra.mxu0 0.0
    %828 = vmatprep.subr.mxu0 0.0
    %829 = vmatpush1.msra.mxu0 0.0
    %830 = vmatprep.subr.mxu0 0.0
    %831 = vmatpush1.msra.mxu0 0.0
    %832 = vmatprep.subr.mxu0 0.0
    %833 = vmatpush1.msra.mxu0 0.0
    %834 = vmatprep.subr.mxu0 0.0
    %835 = vmatpush1.msra.mxu0 0.0
    %836 = vmatprep.subr.mxu0 0.0
    %837 = vmatpush1.msra.mxu0 0.0
    %838 = vmatprep.subr.mxu0 0.0
    %839 = vmatpush1.msra.mxu0 0.0
    %840 = vmatprep.subr.mxu0 0.0
    %841 = vmatpush1.msra.mxu0 0.0
    %842 = vmatprep.subr.mxu0 0.0
    %843 = vmatpush1.msra.mxu0 0.0
    %844 = vmatprep.subr.mxu0 0.0
    %845 = vmatpush1.msra.mxu0 0.0
    %846 = vmatprep.subr.mxu0 0.0
    %847 = vmatpush1.msra.mxu0 0.0
    %848 = vmatprep.subr.mxu0 0.0
    %849 = vmatpush1.msra.mxu0 0.0
    %850 = vmatprep.subr.mxu0 0.0
    %851 = vmatpush1.msra.mxu0 0.0
    %852 = vmatprep.subr.mxu0 0.0
    %853 = vmatpush1.msra.mxu0 0.0
    %854 = vmatprep.subr.mxu0 0.0
    %855 = vmatpush1.msra.mxu0 0.0
    %856 = vmatprep.subr.mxu0 0.0
    %857 = vmatpush1.msra.mxu0 0.0
    %858 = vmatprep.subr.mxu0 0.0
    %859 = vmatpush1.msra.mxu0 0.0
    %860 = vmatprep.subr.mxu0 0.0
    %861 = vmatpush1.msra.mxu0 0.0
    %862 = vmatprep.subr.mxu0 0.0
    %863 = vmatpush1.msra.mxu0 0.0
    %864 = vmatprep.mubr.f32.mxu0 0.0
    %865 = vmatmul.mubr.f32.gmra.mrb[0].mxu0 %v798
    %v866 = vpop.f32.mrb[0].mxu0
    %v867 = vadd.f32 0.0, %v866
    %v868 = vpop.f32.mrb[0].mxu0
    %869 = vdwg.mxu0
    %v870 = vadd.f32 %v797, %v867
    %v871 = vxor.u32 %v870, 2147483648
    %v872 = vmul.f32 %v871, 1.442695
    %v873 = vpow.pop %v872
    %v874 = vadd.f32 %v873, 1.0
    %v875 = vrcp.pop %v874
    %v876 = vmul.f32 1.0, %v875
    %v877 = vtanh.pop %v870
    %v878 = vmul.f32 %v876, %v784
    %880 = vrot.lane.b32.xlu0 %v877, 32
    %v881 = vpop.permute.xlu0 %880
    %v883 = vmul.f32 %v876, %v881
    %885 = vrot.lane.b32.xlu0 %v883, 32
    %v886 = vpop.permute.xlu0 %885
    %v888 = vadd.f32 %v878, %v886
    %v889 = vtanh.pop %v888
    %891 = vrot.lane.b32.xlu0 %v889, 32
    %v892 = vpop.permute.xlu0 %891
    %v894 = vmul.f32 %v876, %v892
    %896 = vrot.lane.b32.xlu0 %v894, 64
    %v897 = vpop.permute.xlu0 %896
    %s899 = scalar_lea.vmem [#allocation3], 2
    %900 = vst.msk [vmem:[%s899] sm:$0x3] %vm795, %v897
    %v901 = vld [vmem:[%s305] sm:$0x3]
    %v902 = vsel %vm78, %v897, 0
    %904 = vmatprep.subr.mxu0 0.0
    %905 = vmatpush1.msra.mxu0 %v55
    %906 = vmatprep.subr.mxu0 0.0
    %907 = vmatpush1.msra.mxu0 %v56
    %908 = vmatprep.subr.mxu0 0.0
    %909 = vmatpush1.msra.mxu0 %v57
    %910 = vmatprep.subr.mxu0 0.0
    %911 = vmatpush1.msra.mxu0 %v58
    %912 = vmatprep.subr.mxu0 0.0
    %913 = vmatpush1.msra.mxu0 0.0
    %914 = vmatprep.subr.mxu0 0.0
    %915 = vmatpush1.msra.mxu0 0.0
    %916 = vmatprep.subr.mxu0 0.0
    %917 = vmatpush1.msra.mxu0 0.0
    %918 = vmatprep.subr.mxu0 0.0
    %919 = vmatpush1.msra.mxu0 0.0
    %920 = vmatprep.subr.mxu0 0.0
    %921 = vmatpush1.msra.mxu0 0.0
    %922 = vmatprep.subr.mxu0 0.0
    %923 = vmatpush1.msra.mxu0 0.0
    %924 = vmatprep.subr.mxu0 0.0
    %925 = vmatpush1.msra.mxu0 0.0
    %926 = vmatprep.subr.mxu0 0.0
    %927 = vmatpush1.msra.mxu0 0.0
    %928 = vmatprep.subr.mxu0 0.0
    %929 = vmatpush1.msra.mxu0 0.0
    %930 = vmatprep.subr.mxu0 0.0
    %931 = vmatpush1.msra.mxu0 0.0
    %932 = vmatprep.subr.mxu0 0.0
    %933 = vmatpush1.msra.mxu0 0.0
    %934 = vmatprep.subr.mxu0 0.0
    %935 = vmatpush1.msra.mxu0 0.0
    %936 = vmatprep.subr.mxu0 0.0
    %937 = vmatpush1.msra.mxu0 0.0
    %938 = vmatprep.subr.mxu0 0.0
    %939 = vmatpush1.msra.mxu0 0.0
    %940 = vmatprep.subr.mxu0 0.0
    %941 = vmatpush1.msra.mxu0 0.0
    %942 = vmatprep.subr.mxu0 0.0
    %943 = vmatpush1.msra.mxu0 0.0
    %944 = vmatprep.subr.mxu0 0.0
    %945 = vmatpush1.msra.mxu0 0.0
    %946 = vmatprep.subr.mxu0 0.0
    %947 = vmatpush1.msra.mxu0 0.0
    %948 = vmatprep.subr.mxu0 0.0
    %949 = vmatpush1.msra.mxu0 0.0
    %950 = vmatprep.subr.mxu0 0.0
    %951 = vmatpush1.msra.mxu0 0.0
    %952 = vmatprep.subr.mxu0 0.0
    %953 = vmatpush1.msra.mxu0 0.0
    %954 = vmatprep.subr.mxu0 0.0
    %955 = vmatpush1.msra.mxu0 0.0
    %956 = vmatprep.subr.mxu0 0.0
    %957 = vmatpush1.msra.mxu0 0.0
    %958 = vmatprep.subr.mxu0 0.0
    %959 = vmatpush1.msra.mxu0 0.0
    %960 = vmatprep.subr.mxu0 0.0
    %961 = vmatpush1.msra.mxu0 0.0
    %962 = vmatprep.subr.mxu0 0.0
    %963 = vmatpush1.msra.mxu0 0.0
    %964 = vmatprep.subr.mxu0 0.0
    %965 = vmatpush1.msra.mxu0 0.0
    %966 = vmatprep.subr.mxu0 0.0
    %967 = vmatpush1.msra.mxu0 0.0
    %968 = vmatprep.mubr.f32.mxu0 0.0
    %969 = vmatmul.mubr.f32.gmra.mrb[0].mxu0 %v902
    %v970 = vpop.f32.mrb[0].mxu0
    %v971 = vadd.f32 0.0, %v970
    %v972 = vpop.f32.mrb[0].mxu0
    %973 = vdwg.mxu0
    %v974 = vadd.f32 %v901, %v971
    %v975 = vxor.u32 %v974, 2147483648
    %v976 = vmul.f32 %v975, 1.442695
    %v977 = vpow.pop %v976
    %v978 = vadd.f32 %v977, 1.0
    %v979 = vrcp.pop %v978
    %v980 = vmul.f32 1.0, %v979
    %v981 = vtanh.pop %v974
    %v982 = vmul.f32 %v980, %v888
    %984 = vrot.lane.b32.xlu0 %v981, 32
    %v985 = vpop.permute.xlu0 %984
    %v987 = vmul.f32 %v980, %v985
    %989 = vrot.lane.b32.xlu0 %v987, 32
    %v990 = vpop.permute.xlu0 %989
    %v992 = vadd.f32 %v982, %v990
    %v993 = vtanh.pop %v992
    %995 = vrot.lane.b32.xlu0 %v993, 32
    %v996 = vpop.permute.xlu0 %995
    %v998 = vmul.f32 %v980, %v996
    %1000 = vrot.lane.b32.xlu0 %v998, 64
    %v1001 = vpop.permute.xlu0 %1000
    %s1003 = scalar_lea.vmem [#allocation3], 4
    %1004 = vst.msk [vmem:[%s1003] sm:$0x3] %vm795, %v1001
    %v1005 = vld [vmem:[%s382] sm:$0x3]
    %v1006 = vsel %vm78, %v1001, 0
    %1008 = vmatprep.subr.mxu0 0.0
    %1009 = vmatpush1.msra.mxu0 %v55
    %1010 = vmatprep.subr.mxu0 0.0
    %1011 = vmatpush1.msra.mxu0 %v56
    %1012 = vmatprep.subr.mxu0 0.0
    %1013 = vmatpush1.msra.mxu0 %v57
    %1014 = vmatprep.subr.mxu0 0.0
    %1015 = vmatpush1.msra.mxu0 %v58
    %1016 = vmatprep.subr.mxu0 0.0
    %1017 = vmatpush1.msra.mxu0 0.0
    %1018 = vmatprep.subr.mxu0 0.0
    %1019 = vmatpush1.msra.mxu0 0.0
    %1020 = vmatprep.subr.mxu0 0.0
    %1021 = vmatpush1.msra.mxu0 0.0
    %1022 = vmatprep.subr.mxu0 0.0
    %1023 = vmatpush1.msra.mxu0 0.0
    %1024 = vmatprep.subr.mxu0 0.0
    %1025 = vmatpush1.msra.mxu0 0.0
    %1026 = vmatprep.subr.mxu0 0.0
    %1027 = vmatpush1.msra.mxu0 0.0
    %1028 = vmatprep.subr.mxu0 0.0
    %1029 = vmatpush1.msra.mxu0 0.0
    %1030 = vmatprep.subr.mxu0 0.0
    %1031 = vmatpush1.msra.mxu0 0.0
    %1032 = vmatprep.subr.mxu0 0.0
    %1033 = vmatpush1.msra.mxu0 0.0
    %1034 = vmatprep.subr.mxu0 0.0
    %1035 = vmatpush1.msra.mxu0 0.0
    %1036 = vmatprep.subr.mxu0 0.0
    %1037 = vmatpush1.msra.mxu0 0.0
    %1038 = vmatprep.subr.mxu0 0.0
    %1039 = vmatpush1.msra.mxu0 0.0
    %1040 = vmatprep.subr.mxu0 0.0
    %1041 = vmatpush1.msra.mxu0 0.0
    %1042 = vmatprep.subr.mxu0 0.0
    %1043 = vmatpush1.msra.mxu0 0.0
    %1044 = vmatprep.subr.mxu0 0.0
    %1045 = vmatpush1.msra.mxu0 0.0
    %1046 = vmatprep.subr.mxu0 0.0
    %1047 = vmatpush1.msra.mxu0 0.0
    %1048 = vmatprep.subr.mxu0 0.0
    %1049 = vmatpush1.msra.mxu0 0.0
    %1050 = vmatprep.subr.mxu0 0.0
    %1051 = vmatpush1.msra.mxu0 0.0
    %1052 = vmatprep.subr.mxu0 0.0
    %1053 = vmatpush1.msra.mxu0 0.0
    %1054 = vmatprep.subr.mxu0 0.0
    %1055 = vmatpush1.msra.mxu0 0.0
    %1056 = vmatprep.subr.mxu0 0.0
    %1057 = vmatpush1.msra.mxu0 0.0
    %1058 = vmatprep.subr.mxu0 0.0
    %1059 = vmatpush1.msra.mxu0 0.0
    %1060 = vmatprep.subr.mxu0 0.0
    %1061 = vmatpush1.msra.mxu0 0.0
    %1062 = vmatprep.subr.mxu0 0.0
    %1063 = vmatpush1.msra.mxu0 0.0
    %1064 = vmatprep.subr.mxu0 0.0
    %1065 = vmatpush1.msra.mxu0 0.0
    %1066 = vmatprep.subr.mxu0 0.0
    %1067 = vmatpush1.msra.mxu0 0.0
    %1068 = vmatprep.subr.mxu0 0.0
    %1069 = vmatpush1.msra.mxu0 0.0
    %1070 = vmatprep.subr.mxu0 0.0
    %1071 = vmatpush1.msra.mxu0 0.0
    %1072 = vmatprep.mubr.f32.mxu0 0.0
    %1073 = vmatmul.mubr.f32.gmra.mrb[0].mxu0 %v1006
    %v1074 = vpop.f32.mrb[0].mxu0
    %v1075 = vadd.f32 0.0, %v1074
    %v1076 = vpop.f32.mrb[0].mxu0
    %1077 = vdwg.mxu0
    %v1078 = vadd.f32 %v1005, %v1075
    %v1079 = vxor.u32 %v1078, 2147483648
    %v1080 = vmul.f32 %v1079, 1.442695
    %v1081 = vpow.pop %v1080
    %v1082 = vadd.f32 %v1081, 1.0
    %v1083 = vrcp.pop %v1082
    %v1084 = vmul.f32 1.0, %v1083
    %v1085 = vtanh.pop %v1078
    %v1086 = vmul.f32 %v1084, %v992
    %1088 = vrot.lane.b32.xlu0 %v1085, 32
    %v1089 = vpop.permute.xlu0 %1088
    %v1091 = vmul.f32 %v1084, %v1089
    %1093 = vrot.lane.b32.xlu0 %v1091, 32
    %v1094 = vpop.permute.xlu0 %1093
    %v1096 = vadd.f32 %v1086, %v1094
    %v1097 = vtanh.pop %v1096
    %1099 = vrot.lane.b32.xlu0 %v1097, 32
    %v1100 = vpop.permute.xlu0 %1099
    %v1102 = vmul.f32 %v1084, %v1100
    %1104 = vrot.lane.b32.xlu0 %v1102, 64
    %v1105 = vpop.permute.xlu0 %1104
    %s1107 = scalar_lea.vmem [#allocation3], 6
    %1108 = vst.msk [vmem:[%s1107] sm:$0x3] %vm795, %v1105
    %v1109 = vld [vmem:[%s459] sm:$0x3]
    %v1110 = vsel %vm78, %v1105, 0
    %1112 = vmatprep.subr.mxu0 0.0
    %1113 = vmatpush1.msra.mxu0 %v55
    %1114 = vmatprep.subr.mxu0 0.0
    %1115 = vmatpush1.msra.mxu0 %v56
    %1116 = vmatprep.subr.mxu0 0.0
    %1117 = vmatpush1.msra.mxu0 %v57
    %1118 = vmatprep.subr.mxu0 0.0
    %1119 = vmatpush1.msra.mxu0 %v58
    %1120 = vmatprep.subr.mxu0 0.0
    %1121 = vmatpush1.msra.mxu0 0.0
    %1122 = vmatprep.subr.mxu0 0.0
    %1123 = vmatpush1.msra.mxu0 0.0
    %1124 = vmatprep.subr.mxu0 0.0
    %1125 = vmatpush1.msra.mxu0 0.0
    %1126 = vmatprep.subr.mxu0 0.0
    %1127 = vmatpush1.msra.mxu0 0.0
    %1128 = vmatprep.subr.mxu0 0.0
    %1129 = vmatpush1.msra.mxu0 0.0
    %1130 = vmatprep.subr.mxu0 0.0
    %1131 = vmatpush1.msra.mxu0 0.0
    %1132 = vmatprep.subr.mxu0 0.0
    %1133 = vmatpush1.msra.mxu0 0.0
    %1134 = vmatprep.subr.mxu0 0.0
    %1135 = vmatpush1.msra.mxu0 0.0
    %1136 = vmatprep.subr.mxu0 0.0
    %1137 = vmatpush1.msra.mxu0 0.0
    %1138 = vmatprep.subr.mxu0 0.0
    %1139 = vmatpush1.msra.mxu0 0.0
    %1140 = vmatprep.subr.mxu0 0.0
    %1141 = vmatpush1.msra.mxu0 0.0
    %1142 = vmatprep.subr.mxu0 0.0
    %1143 = vmatpush1.msra.mxu0 0.0
    %1144 = vmatprep.subr.mxu0 0.0
    %1145 = vmatpush1.msra.mxu0 0.0
    %1146 = vmatprep.subr.mxu0 0.0
    %1147 = vmatpush1.msra.mxu0 0.0
    %1148 = vmatprep.subr.mxu0 0.0
    %1149 = vmatpush1.msra.mxu0 0.0
    %1150 = vmatprep.subr.mxu0 0.0
    %1151 = vmatpush1.msra.mxu0 0.0
    %1152 = vmatprep.subr.mxu0 0.0
    %1153 = vmatpush1.msra.mxu0 0.0
    %1154 = vmatprep.subr.mxu0 0.0
    %1155 = vmatpush1.msra.mxu0 0.0
    %1156 = vmatprep.subr.mxu0 0.0
    %1157 = vmatpush1.msra.mxu0 0.0
    %1158 = vmatprep.subr.mxu0 0.0
    %1159 = vmatpush1.msra.mxu0 0.0
    %1160 = vmatprep.subr.mxu0 0.0
    %1161 = vmatpush1.msra.mxu0 0.0
    %1162 = vmatprep.subr.mxu0 0.0
    %1163 = vmatpush1.msra.mxu0 0.0
    %1164 = vmatprep.subr.mxu0 0.0
    %1165 = vmatpush1.msra.mxu0 0.0
    %1166 = vmatprep.subr.mxu0 0.0
    %1167 = vmatpush1.msra.mxu0 0.0
    %1168 = vmatprep.subr.mxu0 0.0
    %1169 = vmatpush1.msra.mxu0 0.0
    %1170 = vmatprep.subr.mxu0 0.0
    %1171 = vmatpush1.msra.mxu0 0.0
    %1172 = vmatprep.subr.mxu0 0.0
    %1173 = vmatpush1.msra.mxu0 0.0
    %1174 = vmatprep.subr.mxu0 0.0
    %1175 = vmatpush1.msra.mxu0 0.0
    %1176 = vmatprep.mubr.f32.mxu0 0.0
    %1177 = vmatmul.mubr.f32.gmra.mrb[0].mxu0 %v1110
    %v1178 = vpop.f32.mrb[0].mxu0
    %v1179 = vadd.f32 0.0, %v1178
    %v1180 = vpop.f32.mrb[0].mxu0
    %1181 = vdwg.mxu0
    %v1182 = vadd.f32 %v1109, %v1179
    %v1183 = vxor.u32 %v1182, 2147483648
    %v1184 = vmul.f32 %v1183, 1.442695
    %v1185 = vpow.pop %v1184
    %v1186 = vadd.f32 %v1185, 1.0
    %v1187 = vrcp.pop %v1186
    %v1188 = vmul.f32 1.0, %v1187
    %v1189 = vtanh.pop %v1182
    %v1190 = vmul.f32 %v1188, %v1096
    %1192 = vrot.lane.b32.xlu0 %v1189, 32
    %v1193 = vpop.permute.xlu0 %1192
    %v1195 = vmul.f32 %v1188, %v1193
    %1197 = vrot.lane.b32.xlu0 %v1195, 32
    %v1198 = vpop.permute.xlu0 %1197
    %v1200 = vadd.f32 %v1190, %v1198
    %v1201 = vtanh.pop %v1200
    %1203 = vrot.lane.b32.xlu0 %v1201, 32
    %v1204 = vpop.permute.xlu0 %1203
    %v1206 = vmul.f32 %v1188, %v1204
    %1208 = vrot.lane.b32.xlu0 %v1206, 64
    %v1209 = vpop.permute.xlu0 %1208
    %s1211 = scalar_lea.vmem [#allocation3], 8
    %1212 = vst.msk [vmem:[%s1211] sm:$0x3] %vm795, %v1209
    %v1213 = vld [vmem:[%s536] sm:$0x3]
    %v1214 = vsel %vm78, %v1209, 0
    %1216 = vmatprep.subr.mxu0 0.0
    %1217 = vmatpush1.msra.mxu0 %v55
    %1218 = vmatprep.subr.mxu0 0.0
    %1219 = vmatpush1.msra.mxu0 %v56
    %1220 = vmatprep.subr.mxu0 0.0
    %1221 = vmatpush1.msra.mxu0 %v57
    %1222 = vmatprep.subr.mxu0 0.0
    %1223 = vmatpush1.msra.mxu0 %v58
    %1224 = vmatprep.subr.mxu0 0.0
    %1225 = vmatpush1.msra.mxu0 0.0
    %1226 = vmatprep.subr.mxu0 0.0
    %1227 = vmatpush1.msra.mxu0 0.0
    %1228 = vmatprep.subr.mxu0 0.0
    %1229 = vmatpush1.msra.mxu0 0.0
    %1230 = vmatprep.subr.mxu0 0.0
    %1231 = vmatpush1.msra.mxu0 0.0
    %1232 = vmatprep.subr.mxu0 0.0
    %1233 = vmatpush1.msra.mxu0 0.0
    %1234 = vmatprep.subr.mxu0 0.0
    %1235 = vmatpush1.msra.mxu0 0.0
    %1236 = vmatprep.subr.mxu0 0.0
    %1237 = vmatpush1.msra.mxu0 0.0
    %1238 = vmatprep.subr.mxu0 0.0
    %1239 = vmatpush1.msra.mxu0 0.0
    %1240 = vmatprep.subr.mxu0 0.0
    %1241 = vmatpush1.msra.mxu0 0.0
    %1242 = vmatprep.subr.mxu0 0.0
    %1243 = vmatpush1.msra.mxu0 0.0
    %1244 = vmatprep.subr.mxu0 0.0
    %1245 = vmatpush1.msra.mxu0 0.0
    %1246 = vmatprep.subr.mxu0 0.0
    %1247 = vmatpush1.msra.mxu0 0.0
    %1248 = vmatprep.subr.mxu0 0.0
    %1249 = vmatpush1.msra.mxu0 0.0
    %1250 = vmatprep.subr.mxu0 0.0
    %1251 = vmatpush1.msra.mxu0 0.0
    %1252 = vmatprep.subr.mxu0 0.0
    %1253 = vmatpush1.msra.mxu0 0.0
    %1254 = vmatprep.subr.mxu0 0.0
    %1255 = vmatpush1.msra.mxu0 0.0
    %1256 = vmatprep.subr.mxu0 0.0
    %1257 = vmatpush1.msra.mxu0 0.0
    %1258 = vmatprep.subr.mxu0 0.0
    %1259 = vmatpush1.msra.mxu0 0.0
    %1260 = vmatprep.subr.mxu0 0.0
    %1261 = vmatpush1.msra.mxu0 0.0
    %1262 = vmatprep.subr.mxu0 0.0
    %1263 = vmatpush1.msra.mxu0 0.0
    %1264 = vmatprep.subr.mxu0 0.0
    %1265 = vmatpush1.msra.mxu0 0.0
    %1266 = vmatprep.subr.mxu0 0.0
    %1267 = vmatpush1.msra.mxu0 0.0
    %1268 = vmatprep.subr.mxu0 0.0
    %1269 = vmatpush1.msra.mxu0 0.0
    %1270 = vmatprep.subr.mxu0 0.0
    %1271 = vmatpush1.msra.mxu0 0.0
    %1272 = vmatprep.subr.mxu0 0.0
    %1273 = vmatpush1.msra.mxu0 0.0
    %1274 = vmatprep.subr.mxu0 0.0
    %1275 = vmatpush1.msra.mxu0 0.0
    %1276 = vmatprep.subr.mxu0 0.0
    %1277 = vmatpush1.msra.mxu0 0.0
    %1278 = vmatprep.subr.mxu0 0.0
    %1279 = vmatpush1.msra.mxu0 0.0
    %1280 = vmatprep.mubr.f32.mxu0 0.0
    %1281 = vmatmul.mubr.f32.gmra.mrb[0].mxu0 %v1214
    %v1282 = vpop.f32.mrb[0].mxu0
    %v1283 = vadd.f32 0.0, %v1282
    %v1284 = vpop.f32.mrb[0].mxu0
    %1285 = vdwg.mxu0
    %v1286 = vadd.f32 %v1213, %v1283
    %v1287 = vxor.u32 %v1286, 2147483648
    %v1288 = vmul.f32 %v1287, 1.442695
    %v1289 = vpow.pop %v1288
    %v1290 = vadd.f32 %v1289, 1.0
    %v1291 = vrcp.pop %v1290
    %v1292 = vmul.f32 1.0, %v1291
    %v1293 = vtanh.pop %v1286
    %v1294 = vmul.f32 %v1292, %v1200
    %1296 = vrot.lane.b32.xlu0 %v1293, 32
    %v1297 = vpop.permute.xlu0 %1296
    %v1299 = vmul.f32 %v1292, %v1297
    %1301 = vrot.lane.b32.xlu0 %v1299, 32
    %v1302 = vpop.permute.xlu0 %1301
    %v1304 = vadd.f32 %v1294, %v1302
    %v1305 = vtanh.pop %v1304
    %1307 = vrot.lane.b32.xlu0 %v1305, 32
    %v1308 = vpop.permute.xlu0 %1307
    %v1310 = vmul.f32 %v1292, %v1308
    %1312 = vrot.lane.b32.xlu0 %v1310, 64
    %v1313 = vpop.permute.xlu0 %1312
    %s1315 = scalar_lea.vmem [#allocation3], 10
    %1316 = vst.msk [vmem:[%s1315] sm:$0x3] %vm795, %v1313
    %v1317 = vld [vmem:[%s613] sm:$0x3]
    %v1318 = vsel %vm78, %v1313, 0
    %1320 = vmatprep.subr.mxu0 0.0
    %1321 = vmatpush1.msra.mxu0 %v55
    %1322 = vmatprep.subr.mxu0 0.0
    %1323 = vmatpush1.msra.mxu0 %v56
    %1324 = vmatprep.subr.mxu0 0.0
    %1325 = vmatpush1.msra.mxu0 %v57
    %1326 = vmatprep.subr.mxu0 0.0
    %1327 = vmatpush1.msra.mxu0 %v58
    %1328 = vmatprep.subr.mxu0 0.0
    %1329 = vmatpush1.msra.mxu0 0.0
    %1330 = vmatprep.subr.mxu0 0.0
    %1331 = vmatpush1.msra.mxu0 0.0
    %1332 = vmatprep.subr.mxu0 0.0
    %1333 = vmatpush1.msra.mxu0 0.0
    %1334 = vmatprep.subr.mxu0 0.0
    %1335 = vmatpush1.msra.mxu0 0.0
    %1336 = vmatprep.subr.mxu0 0.0
    %1337 = vmatpush1.msra.mxu0 0.0
    %1338 = vmatprep.subr.mxu0 0.0
    %1339 = vmatpush1.msra.mxu0 0.0
    %1340 = vmatprep.subr.mxu0 0.0
    %1341 = vmatpush1.msra.mxu0 0.0
    %1342 = vmatprep.subr.mxu0 0.0
    %1343 = vmatpush1.msra.mxu0 0.0
    %1344 = vmatprep.subr.mxu0 0.0
    %1345 = vmatpush1.msra.mxu0 0.0
    %1346 = vmatprep.subr.mxu0 0.0
    %1347 = vmatpush1.msra.mxu0 0.0
    %1348 = vmatprep.subr.mxu0 0.0
    %1349 = vmatpush1.msra.mxu0 0.0
    %1350 = vmatprep.subr.mxu0 0.0
    %1351 = vmatpush1.msra.mxu0 0.0
    %1352 = vmatprep.subr.mxu0 0.0
    %1353 = vmatpush1.msra.mxu0 0.0
    %1354 = vmatprep.subr.mxu0 0.0
    %1355 = vmatpush1.msra.mxu0 0.0
    %1356 = vmatprep.subr.mxu0 0.0
    %1357 = vmatpush1.msra.mxu0 0.0
    %1358 = vmatprep.subr.mxu0 0.0
    %1359 = vmatpush1.msra.mxu0 0.0
    %1360 = vmatprep.subr.mxu0 0.0
    %1361 = vmatpush1.msra.mxu0 0.0
    %1362 = vmatprep.subr.mxu0 0.0
    %1363 = vmatpush1.msra.mxu0 0.0
    %1364 = vmatprep.subr.mxu0 0.0
    %1365 = vmatpush1.msra.mxu0 0.0
    %1366 = vmatprep.subr.mxu0 0.0
    %1367 = vmatpush1.msra.mxu0 0.0
    %1368 = vmatprep.subr.mxu0 0.0
    %1369 = vmatpush1.msra.mxu0 0.0
    %1370 = vmatprep.subr.mxu0 0.0
    %1371 = vmatpush1.msra.mxu0 0.0
    %1372 = vmatprep.subr.mxu0 0.0
    %1373 = vmatpush1.msra.mxu0 0.0
    %1374 = vmatprep.subr.mxu0 0.0
    %1375 = vmatpush1.msra.mxu0 0.0
    %1376 = vmatprep.subr.mxu0 0.0
    %1377 = vmatpush1.msra.mxu0 0.0
    %1378 = vmatprep.subr.mxu0 0.0
    %1379 = vmatpush1.msra.mxu0 0.0
    %1380 = vmatprep.subr.mxu0 0.0
    %1381 = vmatpush1.msra.mxu0 0.0
    %1382 = vmatprep.subr.mxu0 0.0
    %1383 = vmatpush1.msra.mxu0 0.0
    %1384 = vmatprep.mubr.f32.mxu0 0.0
    %1385 = vmatmul.mubr.f32.gmra.mrb[0].mxu0 %v1318
    %v1386 = vpop.f32.mrb[0].mxu0
    %v1387 = vadd.f32 0.0, %v1386
    %v1388 = vpop.f32.mrb[0].mxu0
    %1389 = vdwg.mxu0
    %v1390 = vadd.f32 %v1317, %v1387
    %v1391 = vxor.u32 %v1390, 2147483648
    %v1392 = vmul.f32 %v1391, 1.442695
    %v1393 = vpow.pop %v1392
    %v1394 = vadd.f32 %v1393, 1.0
    %v1395 = vrcp.pop %v1394
    %v1396 = vmul.f32 1.0, %v1395
    %v1397 = vtanh.pop %v1390
    %v1398 = vmul.f32 %v1396, %v1304
    %1400 = vrot.lane.b32.xlu0 %v1397, 32
    %v1401 = vpop.permute.xlu0 %1400
    %v1403 = vmul.f32 %v1396, %v1401
    %1405 = vrot.lane.b32.xlu0 %v1403, 32
    %v1406 = vpop.permute.xlu0 %1405
    %v1408 = vadd.f32 %v1398, %v1406
    %v1409 = vtanh.pop %v1408
    %1411 = vrot.lane.b32.xlu0 %v1409, 32
    %v1412 = vpop.permute.xlu0 %1411
    %v1414 = vmul.f32 %v1396, %v1412
    %1416 = vrot.lane.b32.xlu0 %v1414, 64
    %v1417 = vpop.permute.xlu0 %1416
    %s1419 = scalar_lea.vmem [#allocation3], 12
    %1420 = vst.msk [vmem:[%s1419] sm:$0x3] %vm795, %v1417
    %v1421 = vld [vmem:[%s690] sm:$0x3]
    %v1422 = vsel %vm78, %v1417, 0
    %1424 = vmatprep.subr.mxu0 0.0
    %1425 = vmatpush1.msra.mxu0 %v55
    %1426 = vmatprep.subr.mxu0 0.0
    %1427 = vmatpush1.msra.mxu0 %v56
    %1428 = vmatprep.subr.mxu0 0.0
    %1429 = vmatpush1.msra.mxu0 %v57
    %1430 = vmatprep.subr.mxu0 0.0
    %1431 = vmatpush1.msra.mxu0 %v58
    %1432 = vmatprep.subr.mxu0 0.0
    %1433 = vmatpush1.msra.mxu0 0.0
    %1434 = vmatprep.subr.mxu0 0.0
    %1435 = vmatpush1.msra.mxu0 0.0
    %1436 = vmatprep.subr.mxu0 0.0
    %1437 = vmatpush1.msra.mxu0 0.0
    %1438 = vmatprep.subr.mxu0 0.0
    %1439 = vmatpush1.msra.mxu0 0.0
    %1440 = vmatprep.subr.mxu0 0.0
    %1441 = vmatpush1.msra.mxu0 0.0
    %1442 = vmatprep.subr.mxu0 0.0
    %1443 = vmatpush1.msra.mxu0 0.0
    %1444 = vmatprep.subr.mxu0 0.0
    %1445 = vmatpush1.msra.mxu0 0.0
    %1446 = vmatprep.subr.mxu0 0.0
    %1447 = vmatpush1.msra.mxu0 0.0
    %1448 = vmatprep.subr.mxu0 0.0
    %1449 = vmatpush1.msra.mxu0 0.0
    %1450 = vmatprep.subr.mxu0 0.0
    %1451 = vmatpush1.msra.mxu0 0.0
    %1452 = vmatprep.subr.mxu0 0.0
    %1453 = vmatpush1.msra.mxu0 0.0
    %1454 = vmatprep.subr.mxu0 0.0
    %1455 = vmatpush1.msra.mxu0 0.0
    %1456 = vmatprep.subr.mxu0 0.0
    %1457 = vmatpush1.msra.mxu0 0.0
    %1458 = vmatprep.subr.mxu0 0.0
    %1459 = vmatpush1.msra.mxu0 0.0
    %1460 = vmatprep.subr.mxu0 0.0
    %1461 = vmatpush1.msra.mxu0 0.0
    %1462 = vmatprep.subr.mxu0 0.0
    %1463 = vmatpush1.msra.mxu0 0.0
    %1464 = vmatprep.subr.mxu0 0.0
    %1465 = vmatpush1.msra.mxu0 0.0
    %1466 = vmatprep.subr.mxu0 0.0
    %1467 = vmatpush1.msra.mxu0 0.0
    %1468 = vmatprep.subr.mxu0 0.0
    %1469 = vmatpush1.msra.mxu0 0.0
    %1470 = vmatprep.subr.mxu0 0.0
    %1471 = vmatpush1.msra.mxu0 0.0
    %1472 = vmatprep.subr.mxu0 0.0
    %1473 = vmatpush1.msra.mxu0 0.0
    %1474 = vmatprep.subr.mxu0 0.0
    %1475 = vmatpush1.msra.mxu0 0.0
    %1476 = vmatprep.subr.mxu0 0.0
    %1477 = vmatpush1.msra.mxu0 0.0
    %1478 = vmatprep.subr.mxu0 0.0
    %1479 = vmatpush1.msra.mxu0 0.0
    %1480 = vmatprep.subr.mxu0 0.0
    %1481 = vmatpush1.msra.mxu0 0.0
    %1482 = vmatprep.subr.mxu0 0.0
    %1483 = vmatpush1.msra.mxu0 0.0
    %1484 = vmatprep.subr.mxu0 0.0
    %1485 = vmatpush1.msra.mxu0 0.0
    %1486 = vmatprep.subr.mxu0 0.0
    %1487 = vmatpush1.msra.mxu0 0.0
    %1488 = vmatprep.mubr.f32.mxu0 0.0
    %1489 = vmatmul.mubr.f32.gmra.mrb[0].mxu0 %v1422
    %v1490 = vpop.f32.mrb[0].mxu0
    %v1491 = vadd.f32 0.0, %v1490
    %v1492 = vpop.f32.mrb[0].mxu0
    %1493 = vdwg.mxu0
    %v1494 = vadd.f32 %v1421, %v1491
    %v1495 = vxor.u32 %v1494, 2147483648
    %v1496 = vmul.f32 %v1495, 1.442695
    %v1497 = vpow.pop %v1496
    %v1498 = vadd.f32 %v1497, 1.0
    %v1499 = vrcp.pop %v1498
    %v1500 = vmul.f32 1.0, %v1499
    %v1501 = vtanh.pop %v1494
    %v1502 = vmul.f32 %v1500, %v1408
    %1504 = vrot.lane.b32.xlu0 %v1501, 32
    %v1505 = vpop.permute.xlu0 %1504
    %v1507 = vmul.f32 %v1500, %v1505
    %1509 = vrot.lane.b32.xlu0 %v1507, 32
    %v1510 = vpop.permute.xlu0 %1509
    %v1512 = vadd.f32 %v1502, %v1510
    %v1513 = vtanh.pop %v1512
    %1515 = vrot.lane.b32.xlu0 %v1513, 32
    %v1516 = vpop.permute.xlu0 %1515
    %v1518 = vmul.f32 %v1500, %v1516
    %1520 = vrot.lane.b32.xlu0 %v1518, 64
    %v1521 = vpop.permute.xlu0 %1520
    %s1523 = scalar_lea.vmem [#allocation3], 14
    %1524 = vst.msk [vmem:[%s1523] sm:$0x3] %vm795, %v1521
    %v1525 = vld [vmem:[#allocation3] sm:$0x3]
    %v1527 = vsel %vm78, %v1525, 0
    %1529 = vmatprep.subr.mxu0 0.0
    %1530 = vmatpush1.msra.mxu0 %v59
    %1531 = vmatprep.subr.mxu0 0.0
    %1532 = vmatpush1.msra.mxu0 %v60
    %1533 = vmatprep.subr.mxu0 0.0
    %1534 = vmatpush1.msra.mxu0 %v61
    %1535 = vmatprep.subr.mxu0 0.0
    %1536 = vmatpush1.msra.mxu0 %v62
    %1537 = vmatprep.subr.mxu0 0.0
    %1538 = vmatpush1.msra.mxu0 0.0
    %1539 = vmatprep.subr.mxu0 0.0
    %1540 = vmatpush1.msra.mxu0 0.0
    %1541 = vmatprep.subr.mxu0 0.0
    %1542 = vmatpush1.msra.mxu0 0.0
    %1543 = vmatprep.subr.mxu0 0.0
    %1544 = vmatpush1.msra.mxu0 0.0
    %1545 = vmatprep.subr.mxu0 0.0
    %1546 = vmatpush1.msra.mxu0 0.0
    %1547 = vmatprep.subr.mxu0 0.0
    %1548 = vmatpush1.msra.mxu0 0.0
    %1549 = vmatprep.subr.mxu0 0.0
    %1550 = vmatpush1.msra.mxu0 0.0
    %1551 = vmatprep.subr.mxu0 0.0
    %1552 = vmatpush1.msra.mxu0 0.0
    %1553 = vmatprep.subr.mxu0 0.0
    %1554 = vmatpush1.msra.mxu0 0.0
    %1555 = vmatprep.subr.mxu0 0.0
    %1556 = vmatpush1.msra.mxu0 0.0
    %1557 = vmatprep.subr.mxu0 0.0
    %1558 = vmatpush1.msra.mxu0 0.0
    %1559 = vmatprep.subr.mxu0 0.0
    %1560 = vmatpush1.msra.mxu0 0.0
    %1561 = vmatprep.subr.mxu0 0.0
    %1562 = vmatpush1.msra.mxu0 0.0
    %1563 = vmatprep.subr.mxu0 0.0
    %1564 = vmatpush1.msra.mxu0 0.0
    %1565 = vmatprep.subr.mxu0 0.0
    %1566 = vmatpush1.msra.mxu0 0.0
    %1567 = vmatprep.subr.mxu0 0.0
    %1568 = vmatpush1.msra.mxu0 0.0
    %1569 = vmatprep.subr.mxu0 0.0
    %1570 = vmatpush1.msra.mxu0 0.0
    %1571 = vmatprep.subr.mxu0 0.0
    %1572 = vmatpush1.msra.mxu0 0.0
    %1573 = vmatprep.subr.mxu0 0.0
    %1574 = vmatpush1.msra.mxu0 0.0
    %1575 = vmatprep.subr.mxu0 0.0
    %1576 = vmatpush1.msra.mxu0 0.0
    %1577 = vmatprep.subr.mxu0 0.0
    %1578 = vmatpush1.msra.mxu0 0.0
    %1579 = vmatprep.subr.mxu0 0.0
    %1580 = vmatpush1.msra.mxu0 0.0
    %1581 = vmatprep.subr.mxu0 0.0
    %1582 = vmatpush1.msra.mxu0 0.0
    %1583 = vmatprep.subr.mxu0 0.0
    %1584 = vmatpush1.msra.mxu0 0.0
    %1585 = vmatprep.subr.mxu0 0.0
    %1586 = vmatpush1.msra.mxu0 0.0
    %1587 = vmatprep.subr.mxu0 0.0
    %1588 = vmatpush1.msra.mxu0 0.0
    %1589 = vmatprep.subr.mxu0 0.0
    %1590 = vmatpush1.msra.mxu0 0.0
    %1591 = vmatprep.subr.mxu0 0.0
    %1592 = vmatpush1.msra.mxu0 0.0
    %1593 = vmatprep.mubr.f32.mxu0 0.0
    %1594 = vmatmul.mubr.f32.gmra.mrb[0].mxu0 %v1527
    %v1595 = vpop.f32.mrb[0].mxu0
    %v1596 = vadd.f32 %v75, %v1595
    %v1597 = vpop.f32.mrb[0].mxu0
    %1598 = vdwg.mxu0
    %vm1599 = vcmask 9216
    %1600 = vst.msk [vmem:[%s6] sm:$0x3] %vm1599, %v1596
    %v1601 = vld [vmem:[%s899] sm:$0x3]
    %v1603 = vsel %vm78, %v1601, 0
    %1605 = vmatprep.subr.mxu0 0.0
    %1606 = vmatpush1.msra.mxu0 %v59
    %1607 = vmatprep.subr.mxu0 0.0
    %1608 = vmatpush1.msra.mxu0 %v60
    %1609 = vmatprep.subr.mxu0 0.0
    %1610 = vmatpush1.msra.mxu0 %v61
    %1611 = vmatprep.subr.mxu0 0.0
    %1612 = vmatpush1.msra.mxu0 %v62
    %1613 = vmatprep.subr.mxu0 0.0
    %1614 = vmatpush1.msra.mxu0 0.0
    %1615 = vmatprep.subr.mxu0 0.0
    %1616 = vmatpush1.msra.mxu0 0.0
    %1617 = vmatprep.subr.mxu0 0.0
    %1618 = vmatpush1.msra.mxu0 0.0
    %1619 = vmatprep.subr.mxu0 0.0
    %1620 = vmatpush1.msra.mxu0 0.0
    %1621 = vmatprep.subr.mxu0 0.0
    %1622 = vmatpush1.msra.mxu0 0.0
    %1623 = vmatprep.subr.mxu0 0.0
    %1624 = vmatpush1.msra.mxu0 0.0
    %1625 = vmatprep.subr.mxu0 0.0
    %1626 = vmatpush1.msra.mxu0 0.0
    %1627 = vmatprep.subr.mxu0 0.0
    %1628 = vmatpush1.msra.mxu0 0.0
    %1629 = vmatprep.subr.mxu0 0.0
    %1630 = vmatpush1.msra.mxu0 0.0
    %1631 = vmatprep.subr.mxu0 0.0
    %1632 = vmatpush1.msra.mxu0 0.0
    %1633 = vmatprep.subr.mxu0 0.0
    %1634 = vmatpush1.msra.mxu0 0.0
    %1635 = vmatprep.subr.mxu0 0.0
    %1636 = vmatpush1.msra.mxu0 0.0
    %1637 = vmatprep.subr.mxu0 0.0
    %1638 = vmatpush1.msra.mxu0 0.0
    %1639 = vmatprep.subr.mxu0 0.0
    %1640 = vmatpush1.msra.mxu0 0.0
    %1641 = vmatprep.subr.mxu0 0.0
    %1642 = vmatpush1.msra.mxu0 0.0
    %1643 = vmatprep.subr.mxu0 0.0
    %1644 = vmatpush1.msra.mxu0 0.0
    %1645 = vmatprep.subr.mxu0 0.0
    %1646 = vmatpush1.msra.mxu0 0.0
    %1647 = vmatprep.subr.mxu0 0.0
    %1648 = vmatpush1.msra.mxu0 0.0
    %1649 = vmatprep.subr.mxu0 0.0
    %1650 = vmatpush1.msra.mxu0 0.0
    %1651 = vmatprep.subr.mxu0 0.0
    %1652 = vmatpush1.msra.mxu0 0.0
    %1653 = vmatprep.subr.mxu0 0.0
    %1654 = vmatpush1.msra.mxu0 0.0
    %1655 = vmatprep.subr.mxu0 0.0
    %1656 = vmatpush1.msra.mxu0 0.0
    %1657 = vmatprep.subr.mxu0 0.0
    %1658 = vmatpush1.msra.mxu0 0.0
    %1659 = vmatprep.subr.mxu0 0.0
    %1660 = vmatpush1.msra.mxu0 0.0
    %1661 = vmatprep.subr.mxu0 0.0
    %1662 = vmatpush1.msra.mxu0 0.0
    %1663 = vmatprep.subr.mxu0 0.0
    %1664 = vmatpush1.msra.mxu0 0.0
    %1665 = vmatprep.subr.mxu0 0.0
    %1666 = vmatpush1.msra.mxu0 0.0
    %1667 = vmatprep.subr.mxu0 0.0
    %1668 = vmatpush1.msra.mxu0 0.0
    %1669 = vmatprep.mubr.f32.mxu0 0.0
    %1670 = vmatmul.mubr.f32.gmra.mrb[0].mxu0 %v1603
    %v1671 = vpop.f32.mrb[0].mxu0
    %v1672 = vadd.f32 %v75, %v1671
    %v1673 = vpop.f32.mrb[0].mxu0
    %1674 = vdwg.mxu0
    %s1675 = scalar_lea.vmem %s6, 2
    %1676 = vst.msk [vmem:[%s1675] sm:$0x3] %vm1599, %v1672
    %v1677 = vld [vmem:[%s1003] sm:$0x3]
    %v1679 = vsel %vm78, %v1677, 0
    %1681 = vmatprep.subr.mxu0 0.0
    %1682 = vmatpush1.msra.mxu0 %v59
    %1683 = vmatprep.subr.mxu0 0.0
    %1684 = vmatpush1.msra.mxu0 %v60
    %1685 = vmatprep.subr.mxu0 0.0
    %1686 = vmatpush1.msra.mxu0 %v61
    %1687 = vmatprep.subr.mxu0 0.0
    %1688 = vmatpush1.msra.mxu0 %v62
    %1689 = vmatprep.subr.mxu0 0.0
    %1690 = vmatpush1.msra.mxu0 0.0
    %1691 = vmatprep.subr.mxu0 0.0
    %1692 = vmatpush1.msra.mxu0 0.0
    %1693 = vmatprep.subr.mxu0 0.0
    %1694 = vmatpush1.msra.mxu0 0.0
    %1695 = vmatprep.subr.mxu0 0.0
    %1696 = vmatpush1.msra.mxu0 0.0
    %1697 = vmatprep.subr.mxu0 0.0
    %1698 = vmatpush1.msra.mxu0 0.0
    %1699 = vmatprep.subr.mxu0 0.0
    %1700 = vmatpush1.msra.mxu0 0.0
    %1701 = vmatprep.subr.mxu0 0.0
    %1702 = vmatpush1.msra.mxu0 0.0
    %1703 = vmatprep.subr.mxu0 0.0
    %1704 = vmatpush1.msra.mxu0 0.0
    %1705 = vmatprep.subr.mxu0 0.0
    %1706 = vmatpush1.msra.mxu0 0.0
    %1707 = vmatprep.subr.mxu0 0.0
    %1708 = vmatpush1.msra.mxu0 0.0
    %1709 = vmatprep.subr.mxu0 0.0
    %1710 = vmatpush1.msra.mxu0 0.0
    %1711 = vmatprep.subr.mxu0 0.0
    %1712 = vmatpush1.msra.mxu0 0.0
    %1713 = vmatprep.subr.mxu0 0.0
    %1714 = vmatpush1.msra.mxu0 0.0
    %1715 = vmatprep.subr.mxu0 0.0
    %1716 = vmatpush1.msra.mxu0 0.0
    %1717 = vmatprep.subr.mxu0 0.0
    %1718 = vmatpush1.msra.mxu0 0.0
    %1719 = vmatprep.subr.mxu0 0.0
    %1720 = vmatpush1.msra.mxu0 0.0
    %1721 = vmatprep.subr.mxu0 0.0
    %1722 = vmatpush1.msra.mxu0 0.0
    %1723 = vmatprep.subr.mxu0 0.0
    %1724 = vmatpush1.msra.mxu0 0.0
    %1725 = vmatprep.subr.mxu0 0.0
    %1726 = vmatpush1.msra.mxu0 0.0
    %1727 = vmatprep.subr.mxu0 0.0
    %1728 = vmatpush1.msra.mxu0 0.0
    %1729 = vmatprep.subr.mxu0 0.0
    %1730 = vmatpush1.msra.mxu0 0.0
    %1731 = vmatprep.subr.mxu0 0.0
    %1732 = vmatpush1.msra.mxu0 0.0
    %1733 = vmatprep.subr.mxu0 0.0
    %1734 = vmatpush1.msra.mxu0 0.0
    %1735 = vmatprep.subr.mxu0 0.0
    %1736 = vmatpush1.msra.mxu0 0.0
    %1737 = vmatprep.subr.mxu0 0.0
    %1738 = vmatpush1.msra.mxu0 0.0
    %1739 = vmatprep.subr.mxu0 0.0
    %1740 = vmatpush1.msra.mxu0 0.0
    %1741 = vmatprep.subr.mxu0 0.0
    %1742 = vmatpush1.msra.mxu0 0.0
    %1743 = vmatprep.subr.mxu0 0.0
    %1744 = vmatpush1.msra.mxu0 0.0
    %1745 = vmatprep.mubr.f32.mxu0 0.0
    %1746 = vmatmul.mubr.f32.gmra.mrb[0].mxu0 %v1679
    %v1747 = vpop.f32.mrb[0].mxu0
    %v1748 = vadd.f32 %v75, %v1747
    %v1749 = vpop.f32.mrb[0].mxu0
    %1750 = vdwg.mxu0
    %s1751 = scalar_lea.vmem %s6, 4
    %1752 = vst.msk [vmem:[%s1751] sm:$0x3] %vm1599, %v1748
    %v1753 = vld [vmem:[%s1107] sm:$0x3]
    %v1755 = vsel %vm78, %v1753, 0
    %1757 = vmatprep.subr.mxu0 0.0
    %1758 = vmatpush1.msra.mxu0 %v59
    %1759 = vmatprep.subr.mxu0 0.0
    %1760 = vmatpush1.msra.mxu0 %v60
    %1761 = vmatprep.subr.mxu0 0.0
    %1762 = vmatpush1.msra.mxu0 %v61
    %1763 = vmatprep.subr.mxu0 0.0
    %1764 = vmatpush1.msra.mxu0 %v62
    %1765 = vmatprep.subr.mxu0 0.0
    %1766 = vmatpush1.msra.mxu0 0.0
    %1767 = vmatprep.subr.mxu0 0.0
    %1768 = vmatpush1.msra.mxu0 0.0
    %1769 = vmatprep.subr.mxu0 0.0
    %1770 = vmatpush1.msra.mxu0 0.0
    %1771 = vmatprep.subr.mxu0 0.0
    %1772 = vmatpush1.msra.mxu0 0.0
    %1773 = vmatprep.subr.mxu0 0.0
    %1774 = vmatpush1.msra.mxu0 0.0
    %1775 = vmatprep.subr.mxu0 0.0
    %1776 = vmatpush1.msra.mxu0 0.0
    %1777 = vmatprep.subr.mxu0 0.0
    %1778 = vmatpush1.msra.mxu0 0.0
    %1779 = vmatprep.subr.mxu0 0.0
    %1780 = vmatpush1.msra.mxu0 0.0
    %1781 = vmatprep.subr.mxu0 0.0
    %1782 = vmatpush1.msra.mxu0 0.0
    %1783 = vmatprep.subr.mxu0 0.0
    %1784 = vmatpush1.msra.mxu0 0.0
    %1785 = vmatprep.subr.mxu0 0.0
    %1786 = vmatpush1.msra.mxu0 0.0
    %1787 = vmatprep.subr.mxu0 0.0
    %1788 = vmatpush1.msra.mxu0 0.0
    %1789 = vmatprep.subr.mxu0 0.0
    %1790 = vmatpush1.msra.mxu0 0.0
    %1791 = vmatprep.subr.mxu0 0.0
    %1792 = vmatpush1.msra.mxu0 0.0
    %1793 = vmatprep.subr.mxu0 0.0
    %1794 = vmatpush1.msra.mxu0 0.0
    %1795 = vmatprep.subr.mxu0 0.0
    %1796 = vmatpush1.msra.mxu0 0.0
    %1797 = vmatprep.subr.mxu0 0.0
    %1798 = vmatpush1.msra.mxu0 0.0
    %1799 = vmatprep.subr.mxu0 0.0
    %1800 = vmatpush1.msra.mxu0 0.0
    %1801 = vmatprep.subr.mxu0 0.0
    %1802 = vmatpush1.msra.mxu0 0.0
    %1803 = vmatprep.subr.mxu0 0.0
    %1804 = vmatpush1.msra.mxu0 0.0
    %1805 = vmatprep.subr.mxu0 0.0
    %1806 = vmatpush1.msra.mxu0 0.0
    %1807 = vmatprep.subr.mxu0 0.0
    %1808 = vmatpush1.msra.mxu0 0.0
    %1809 = vmatprep.subr.mxu0 0.0
    %1810 = vmatpush1.msra.mxu0 0.0
    %1811 = vmatprep.subr.mxu0 0.0
    %1812 = vmatpush1.msra.mxu0 0.0
    %1813 = vmatprep.subr.mxu0 0.0
    %1814 = vmatpush1.msra.mxu0 0.0
    %1815 = vmatprep.subr.mxu0 0.0
    %1816 = vmatpush1.msra.mxu0 0.0
    %1817 = vmatprep.subr.mxu0 0.0
    %1818 = vmatpush1.msra.mxu0 0.0
    %1819 = vmatprep.subr.mxu0 0.0
    %1820 = vmatpush1.msra.mxu0 0.0
    %1821 = vmatprep.mubr.f32.mxu0 0.0
    %1822 = vmatmul.mubr.f32.gmra.mrb[0].mxu0 %v1755
    %v1823 = vpop.f32.mrb[0].mxu0
    %v1824 = vadd.f32 %v75, %v1823
    %v1825 = vpop.f32.mrb[0].mxu0
    %1826 = vdwg.mxu0
    %s1827 = scalar_lea.vmem %s6, 6
    %1828 = vst.msk [vmem:[%s1827] sm:$0x3] %vm1599, %v1824
    %v1829 = vld [vmem:[%s1211] sm:$0x3]
    %v1831 = vsel %vm78, %v1829, 0
    %1833 = vmatprep.subr.mxu0 0.0
    %1834 = vmatpush1.msra.mxu0 %v59
    %1835 = vmatprep.subr.mxu0 0.0
    %1836 = vmatpush1.msra.mxu0 %v60
    %1837 = vmatprep.subr.mxu0 0.0
    %1838 = vmatpush1.msra.mxu0 %v61
    %1839 = vmatprep.subr.mxu0 0.0
    %1840 = vmatpush1.msra.mxu0 %v62
    %1841 = vmatprep.subr.mxu0 0.0
    %1842 = vmatpush1.msra.mxu0 0.0
    %1843 = vmatprep.subr.mxu0 0.0
    %1844 = vmatpush1.msra.mxu0 0.0
    %1845 = vmatprep.subr.mxu0 0.0
    %1846 = vmatpush1.msra.mxu0 0.0
    %1847 = vmatprep.subr.mxu0 0.0
    %1848 = vmatpush1.msra.mxu0 0.0
    %1849 = vmatprep.subr.mxu0 0.0
    %1850 = vmatpush1.msra.mxu0 0.0
    %1851 = vmatprep.subr.mxu0 0.0
    %1852 = vmatpush1.msra.mxu0 0.0
    %1853 = vmatprep.subr.mxu0 0.0
    %1854 = vmatpush1.msra.mxu0 0.0
    %1855 = vmatprep.subr.mxu0 0.0
    %1856 = vmatpush1.msra.mxu0 0.0
    %1857 = vmatprep.subr.mxu0 0.0
    %1858 = vmatpush1.msra.mxu0 0.0
    %1859 = vmatprep.subr.mxu0 0.0
    %1860 = vmatpush1.msra.mxu0 0.0
    %1861 = vmatprep.subr.mxu0 0.0
    %1862 = vmatpush1.msra.mxu0 0.0
    %1863 = vmatprep.subr.mxu0 0.0
    %1864 = vmatpush1.msra.mxu0 0.0
    %1865 = vmatprep.subr.mxu0 0.0
    %1866 = vmatpush1.msra.mxu0 0.0
    %1867 = vmatprep.subr.mxu0 0.0
    %1868 = vmatpush1.msra.mxu0 0.0
    %1869 = vmatprep.subr.mxu0 0.0
    %1870 = vmatpush1.msra.mxu0 0.0
    %1871 = vmatprep.subr.mxu0 0.0
    %1872 = vmatpush1.msra.mxu0 0.0
    %1873 = vmatprep.subr.mxu0 0.0
    %1874 = vmatpush1.msra.mxu0 0.0
    %1875 = vmatprep.subr.mxu0 0.0
    %1876 = vmatpush1.msra.mxu0 0.0
    %1877 = vmatprep.subr.mxu0 0.0
    %1878 = vmatpush1.msra.mxu0 0.0
    %1879 = vmatprep.subr.mxu0 0.0
    %1880 = vmatpush1.msra.mxu0 0.0
    %1881 = vmatprep.subr.mxu0 0.0
    %1882 = vmatpush1.msra.mxu0 0.0
    %1883 = vmatprep.subr.mxu0 0.0
    %1884 = vmatpush1.msra.mxu0 0.0
    %1885 = vmatprep.subr.mxu0 0.0
    %1886 = vmatpush1.msra.mxu0 0.0
    %1887 = vmatprep.subr.mxu0 0.0
    %1888 = vmatpush1.msra.mxu0 0.0
    %1889 = vmatprep.subr.mxu0 0.0
    %1890 = vmatpush1.msra.mxu0 0.0
    %1891 = vmatprep.subr.mxu0 0.0
    %1892 = vmatpush1.msra.mxu0 0.0
    %1893 = vmatprep.subr.mxu0 0.0
    %1894 = vmatpush1.msra.mxu0 0.0
    %1895 = vmatprep.subr.mxu0 0.0
    %1896 = vmatpush1.msra.mxu0 0.0
    %1897 = vmatprep.mubr.f32.mxu0 0.0
    %1898 = vmatmul.mubr.f32.gmra.mrb[0].mxu0 %v1831
    %v1899 = vpop.f32.mrb[0].mxu0
    %v1900 = vadd.f32 %v75, %v1899
    %v1901 = vpop.f32.mrb[0].mxu0
    %1902 = vdwg.mxu0
    %s1903 = scalar_lea.vmem %s6, 8
    %1904 = vst.msk [vmem:[%s1903] sm:$0x3] %vm1599, %v1900
    %v1905 = vld [vmem:[%s1315] sm:$0x3]
    %v1907 = vsel %vm78, %v1905, 0
    %1909 = vmatprep.subr.mxu0 0.0
    %1910 = vmatpush1.msra.mxu0 %v59
    %1911 = vmatprep.subr.mxu0 0.0
    %1912 = vmatpush1.msra.mxu0 %v60
    %1913 = vmatprep.subr.mxu0 0.0
    %1914 = vmatpush1.msra.mxu0 %v61
    %1915 = vmatprep.subr.mxu0 0.0
    %1916 = vmatpush1.msra.mxu0 %v62
    %1917 = vmatprep.subr.mxu0 0.0
    %1918 = vmatpush1.msra.mxu0 0.0
    %1919 = vmatprep.subr.mxu0 0.0
    %1920 = vmatpush1.msra.mxu0 0.0
    %1921 = vmatprep.subr.mxu0 0.0
    %1922 = vmatpush1.msra.mxu0 0.0
    %1923 = vmatprep.subr.mxu0 0.0
    %1924 = vmatpush1.msra.mxu0 0.0
    %1925 = vmatprep.subr.mxu0 0.0
    %1926 = vmatpush1.msra.mxu0 0.0
    %1927 = vmatprep.subr.mxu0 0.0
    %1928 = vmatpush1.msra.mxu0 0.0
    %1929 = vmatprep.subr.mxu0 0.0
    %1930 = vmatpush1.msra.mxu0 0.0
    %1931 = vmatprep.subr.mxu0 0.0
    %1932 = vmatpush1.msra.mxu0 0.0
    %1933 = vmatprep.subr.mxu0 0.0
    %1934 = vmatpush1.msra.mxu0 0.0
    %1935 = vmatprep.subr.mxu0 0.0
    %1936 = vmatpush1.msra.mxu0 0.0
    %1937 = vmatprep.subr.mxu0 0.0
    %1938 = vmatpush1.msra.mxu0 0.0
    %1939 = vmatprep.subr.mxu0 0.0
    %1940 = vmatpush1.msra.mxu0 0.0
    %1941 = vmatprep.subr.mxu0 0.0
    %1942 = vmatpush1.msra.mxu0 0.0
    %1943 = vmatprep.subr.mxu0 0.0
    %1944 = vmatpush1.msra.mxu0 0.0
    %1945 = vmatprep.subr.mxu0 0.0
    %1946 = vmatpush1.msra.mxu0 0.0
    %1947 = vmatprep.subr.mxu0 0.0
    %1948 = vmatpush1.msra.mxu0 0.0
    %1949 = vmatprep.subr.mxu0 0.0
    %1950 = vmatpush1.msra.mxu0 0.0
    %1951 = vmatprep.subr.mxu0 0.0
    %1952 = vmatpush1.msra.mxu0 0.0
    %1953 = vmatprep.subr.mxu0 0.0
    %1954 = vmatpush1.msra.mxu0 0.0
    %1955 = vmatprep.subr.mxu0 0.0
    %1956 = vmatpush1.msra.mxu0 0.0
    %1957 = vmatprep.subr.mxu0 0.0
    %1958 = vmatpush1.msra.mxu0 0.0
    %1959 = vmatprep.subr.mxu0 0.0
    %1960 = vmatpush1.msra.mxu0 0.0
    %1961 = vmatprep.subr.mxu0 0.0
    %1962 = vmatpush1.msra.mxu0 0.0
    %1963 = vmatprep.subr.mxu0 0.0
    %1964 = vmatpush1.msra.mxu0 0.0
    %1965 = vmatprep.subr.mxu0 0.0
    %1966 = vmatpush1.msra.mxu0 0.0
    %1967 = vmatprep.subr.mxu0 0.0
    %1968 = vmatpush1.msra.mxu0 0.0
    %1969 = vmatprep.subr.mxu0 0.0
    %1970 = vmatpush1.msra.mxu0 0.0
    %1971 = vmatprep.subr.mxu0 0.0
    %1972 = vmatpush1.msra.mxu0 0.0
    %1973 = vmatprep.mubr.f32.mxu0 0.0
    %1974 = vmatmul.mubr.f32.gmra.mrb[0].mxu0 %v1907
    %v1975 = vpop.f32.mrb[0].mxu0
    %v1976 = vadd.f32 %v75, %v1975
    %v1977 = vpop.f32.mrb[0].mxu0
    %1978 = vdwg.mxu0
    %s1979 = scalar_lea.vmem %s6, 10
    %1980 = vst.msk [vmem:[%s1979] sm:$0x3] %vm1599, %v1976
    %v1981 = vld [vmem:[%s1419] sm:$0x3]
    %v1983 = vsel %vm78, %v1981, 0
    %1985 = vmatprep.subr.mxu0 0.0
    %1986 = vmatpush1.msra.mxu0 %v59
    %1987 = vmatprep.subr.mxu0 0.0
    %1988 = vmatpush1.msra.mxu0 %v60
    %1989 = vmatprep.subr.mxu0 0.0
    %1990 = vmatpush1.msra.mxu0 %v61
    %1991 = vmatprep.subr.mxu0 0.0
    %1992 = vmatpush1.msra.mxu0 %v62
    %1993 = vmatprep.subr.mxu0 0.0
    %1994 = vmatpush1.msra.mxu0 0.0
    %1995 = vmatprep.subr.mxu0 0.0
    %1996 = vmatpush1.msra.mxu0 0.0
    %1997 = vmatprep.subr.mxu0 0.0
    %1998 = vmatpush1.msra.mxu0 0.0
    %1999 = vmatprep.subr.mxu0 0.0
    %2000 = vmatpush1.msra.mxu0 0.0
    %2001 = vmatprep.subr.mxu0 0.0
    %2002 = vmatpush1.msra.mxu0 0.0
    %2003 = vmatprep.subr.mxu0 0.0
    %2004 = vmatpush1.msra.mxu0 0.0
    %2005 = vmatprep.subr.mxu0 0.0
    %2006 = vmatpush1.msra.mxu0 0.0
    %2007 = vmatprep.subr.mxu0 0.0
    %2008 = vmatpush1.msra.mxu0 0.0
    %2009 = vmatprep.subr.mxu0 0.0
    %2010 = vmatpush1.msra.mxu0 0.0
    %2011 = vmatprep.subr.mxu0 0.0
    %2012 = vmatpush1.msra.mxu0 0.0
    %2013 = vmatprep.subr.mxu0 0.0
    %2014 = vmatpush1.msra.mxu0 0.0
    %2015 = vmatprep.subr.mxu0 0.0
    %2016 = vmatpush1.msra.mxu0 0.0
    %2017 = vmatprep.subr.mxu0 0.0
    %2018 = vmatpush1.msra.mxu0 0.0
    %2019 = vmatprep.subr.mxu0 0.0
    %2020 = vmatpush1.msra.mxu0 0.0
    %2021 = vmatprep.subr.mxu0 0.0
    %2022 = vmatpush1.msra.mxu0 0.0
    %2023 = vmatprep.subr.mxu0 0.0
    %2024 = vmatpush1.msra.mxu0 0.0
    %2025 = vmatprep.subr.mxu0 0.0
    %2026 = vmatpush1.msra.mxu0 0.0
    %2027 = vmatprep.subr.mxu0 0.0
    %2028 = vmatpush1.msra.mxu0 0.0
    %2029 = vmatprep.subr.mxu0 0.0
    %2030 = vmatpush1.msra.mxu0 0.0
    %2031 = vmatprep.subr.mxu0 0.0
    %2032 = vmatpush1.msra.mxu0 0.0
    %2033 = vmatprep.subr.mxu0 0.0
    %2034 = vmatpush1.msra.mxu0 0.0
    %2035 = vmatprep.subr.mxu0 0.0
    %2036 = vmatpush1.msra.mxu0 0.0
    %2037 = vmatprep.subr.mxu0 0.0
    %2038 = vmatpush1.msra.mxu0 0.0
    %2039 = vmatprep.subr.mxu0 0.0
    %2040 = vmatpush1.msra.mxu0 0.0
    %2041 = vmatprep.subr.mxu0 0.0
    %2042 = vmatpush1.msra.mxu0 0.0
    %2043 = vmatprep.subr.mxu0 0.0
    %2044 = vmatpush1.msra.mxu0 0.0
    %2045 = vmatprep.subr.mxu0 0.0
    %2046 = vmatpush1.msra.mxu0 0.0
    %2047 = vmatprep.subr.mxu0 0.0
    %2048 = vmatpush1.msra.mxu0 0.0
    %2049 = vmatprep.mubr.f32.mxu0 0.0
    %2050 = vmatmul.mubr.f32.gmra.mrb[0].mxu0 %v1983
    %v2051 = vpop.f32.mrb[0].mxu0
    %v2052 = vadd.f32 %v75, %v2051
    %v2053 = vpop.f32.mrb[0].mxu0
    %2054 = vdwg.mxu0
    %s2055 = scalar_lea.vmem %s6, 12
    %2056 = vst.msk [vmem:[%s2055] sm:$0x3] %vm1599, %v2052
    %v2057 = vld [vmem:[%s1523] sm:$0x3]
    %v2059 = vsel %vm78, %v2057, 0
    %2061 = vmatprep.subr.mxu0 0.0
    %2062 = vmatpush1.msra.mxu0 %v59
    %2063 = vmatprep.subr.mxu0 0.0
    %2064 = vmatpush1.msra.mxu0 %v60
    %2065 = vmatprep.subr.mxu0 0.0
    %2066 = vmatpush1.msra.mxu0 %v61
    %2067 = vmatprep.subr.mxu0 0.0
    %2068 = vmatpush1.msra.mxu0 %v62
    %2069 = vmatprep.subr.mxu0 0.0
    %2070 = vmatpush1.msra.mxu0 0.0
    %2071 = vmatprep.subr.mxu0 0.0
    %2072 = vmatpush1.msra.mxu0 0.0
    %2073 = vmatprep.subr.mxu0 0.0
    %2074 = vmatpush1.msra.mxu0 0.0
    %2075 = vmatprep.subr.mxu0 0.0
    %2076 = vmatpush1.msra.mxu0 0.0
    %2077 = vmatprep.subr.mxu0 0.0
    %2078 = vmatpush1.msra.mxu0 0.0
    %2079 = vmatprep.subr.mxu0 0.0
    %2080 = vmatpush1.msra.mxu0 0.0
    %2081 = vmatprep.subr.mxu0 0.0
    %2082 = vmatpush1.msra.mxu0 0.0
    %2083 = vmatprep.subr.mxu0 0.0
    %2084 = vmatpush1.msra.mxu0 0.0
    %2085 = vmatprep.subr.mxu0 0.0
    %2086 = vmatpush1.msra.mxu0 0.0
    %2087 = vmatprep.subr.mxu0 0.0
    %2088 = vmatpush1.msra.mxu0 0.0
    %2089 = vmatprep.subr.mxu0 0.0
    %2090 = vmatpush1.msra.mxu0 0.0
    %2091 = vmatprep.subr.mxu0 0.0
    %2092 = vmatpush1.msra.mxu0 0.0
    %2093 = vmatprep.subr.mxu0 0.0
    %2094 = vmatpush1.msra.mxu0 0.0
    %2095 = vmatprep.subr.mxu0 0.0
    %2096 = vmatpush1.msra.mxu0 0.0
    %2097 = vmatprep.subr.mxu0 0.0
    %2098 = vmatpush1.msra.mxu0 0.0
    %2099 = vmatprep.subr.mxu0 0.0
    %2100 = vmatpush1.msra.mxu0 0.0
    %2101 = vmatprep.subr.mxu0 0.0
    %2102 = vmatpush1.msra.mxu0 0.0
    %2103 = vmatprep.subr.mxu0 0.0
    %2104 = vmatpush1.msra.mxu0 0.0
    %2105 = vmatprep.subr.mxu0 0.0
    %2106 = vmatpush1.msra.mxu0 0.0
    %2107 = vmatprep.subr.mxu0 0.0
    %2108 = vmatpush1.msra.mxu0 0.0
    %2109 = vmatprep.subr.mxu0 0.0
    %2110 = vmatpush1.msra.mxu0 0.0
    %2111 = vmatprep.subr.mxu0 0.0
    %2112 = vmatpush1.msra.mxu0 0.0
    %2113 = vmatprep.subr.mxu0 0.0
    %2114 = vmatpush1.msra.mxu0 0.0
    %2115 = vmatprep.subr.mxu0 0.0
    %2116 = vmatpush1.msra.mxu0 0.0
    %2117 = vmatprep.subr.mxu0 0.0
    %2118 = vmatpush1.msra.mxu0 0.0
    %2119 = vmatprep.subr.mxu0 0.0
    %2120 = vmatpush1.msra.mxu0 0.0
    %2121 = vmatprep.subr.mxu0 0.0
    %2122 = vmatpush1.msra.mxu0 0.0
    %2123 = vmatprep.subr.mxu0 0.0
    %2124 = vmatpush1.msra.mxu0 0.0
    %2125 = vmatprep.mubr.f32.mxu0 0.0
    %2126 = vmatmul.mubr.f32.gmra.mrb[0].mxu0 %v2059
    %v2127 = vpop.f32.mrb[0].mxu0
    %v2128 = vadd.f32 %v75, %v2127
    %v2129 = vpop.f32.mrb[0].mxu0
    %2130 = vdwg.mxu0
    %s2131 = scalar_lea.vmem %s6, 14
    %2132 = vst.msk [vmem:[%s2131] sm:$0x3] %vm1599, %v2128
    // Predicated region
    $region34: #{tpu_custom_call.1} parent=1 // pred_check
      _
    $region35: #{tpu_custom_call.1} parent=1 // pred_check_branch
      %2134 = sbr.rel (0) target = $region37
    $region36: #{tpu_custom_call.1} parent=1 // pred_region
      _
    $region37: #{tpu_custom_call.1} parent=1 // pred_fallthru
      _
    // Predicated region
    $region38: #{tpu_custom_call.1} parent=1 // pred_check
      _
    $region39: #{tpu_custom_call.1} parent=1 // pred_check_branch
      %2136 = sbr.rel (0) target = $region41
    $region40: #{tpu_custom_call.1} parent=1 // pred_region
      _
    $region41: #{tpu_custom_call.1} parent=1 // pred_fallthru
      _
    %2137 = vsyncpa [#allocation5], 1
    %2138 = vsyncpa [#allocation7], 1

</llo_original>
